<compile_context>
chip_gen: v7x
topology: tpu7x:2x2x1
jax: 0.10.0
libtpu: 0.0.40
codegen_flags: <defaults>
</compile_context>

<pallas_src>
import functools

import jax
import jax.numpy as jnp
from jax.experimental import pallas as pl
from jax.experimental.pallas import tpu as pltpu


def _round_up(a, b):
    return (a + b - 1) // b * b


def _choose_tile(num_models, n_rows, max_nt=1024):
    """Pick an N-tile size (multiple of 8, <= max_nt, >=2 tiles when M==1)."""
    n_tiles = max(1, -(-n_rows // max_nt))
    if num_models == 1 and n_rows > 16:
        n_tiles = max(n_tiles, 2)          # keep both v7x TensorCores busy
    nt = _round_up(-(-n_rows // n_tiles), 8)
    nt = min(max_nt, nt)
    n_pad = _round_up(n_rows, nt)
    return nt, n_pad


# ----------------------------------------------------------------------------
# Pallas kernel: one N-tile of one stacked SENNGC model, all lags fused via
# block-diagonal weights.  Single lane-packed output: [coeffs (W*p*p) | preds (p)].
# ----------------------------------------------------------------------------
def _senngc_kernel(*refs, n_extra):
    if n_extra > 0:
        (x_ref, w1_ref, b1_ref, wh_ref, bh_ref, wo_ref, bo_ref,
         r_ref, gm_ref, out_ref) = refs
    else:
        (x_ref, w1_ref, b1_ref, wo_ref, bo_ref, r_ref, gm_ref, out_ref) = refs
        wh_ref = bh_ref = None

    x = x_ref[...]                                                   # (NT, W*p)

    # Fused per-lag MLPs: one matmul per layer over the block-diagonal weights.
    h = jnp.dot(x, w1_ref[...], preferred_element_type=jnp.float32) + b1_ref[...]
    h = jnp.maximum(h, 0.0)
    for l in range(n_extra):                                         # static, unrolled
        h = jnp.dot(h, wh_ref[l], preferred_element_type=jnp.float32) + bh_ref[l]
        h = jnp.maximum(h, 0.0)
    coeffs = jnp.dot(h, wo_ref[...], preferred_element_type=jnp.float32) + bo_ref[...]
    # coeffs: (NT, W*p*p), lane b = k*p*p + i*p + j == coeffs[n, k, i, j].

    # preds[n, i] = sum_{k, j} coeffs[n, k, i, j] * x[n, k, j]
    # Lane replication via a 0/1 matmul on the otherwise-idle MXU (no jnp.tile).
    x_rep = jnp.dot(x, r_ref[...], preferred_element_type=jnp.float32)      # (NT, W*p*p)
    preds = jnp.dot(coeffs * x_rep, gm_ref[...], preferred_element_type=jnp.float32)  # (NT, p)

    # Single lane-packed store: [coeffs | preds].
    out_ref[...] = jnp.concatenate([coeffs, preds], axis=-1)


# ----------------------------------------------------------------------------
# Parameter preparation: per-lag weights -> block-diagonal fused weights.
# ----------------------------------------------------------------------------
def stack_params(param_dicts):
    return {k: jnp.stack([pd[k] for pd in param_dicts], axis=0)
            for k in ("w1", "b1", "wh", "bh", "wo", "bo")}


def _block_diag_lags(w):
    """(..., W, a, b) -> (..., W*a, W*b) block diagonal over the lag axis."""
    *lead, Wl, a, b = w.shape
    eye = jnp.eye(Wl, dtype=w.dtype)
    out = w[..., :, :, None, :] * eye[:, None, :, None]          # (..., W, a, W, b)
    return out.reshape(*lead, Wl * a, Wl * b)


def _concat_lags_bias(b):
    """(..., W, 1, c) -> (..., 1, W*c) lane-concatenated bias."""
    *lead, Wl, one, c = b.shape
    return jnp.swapaxes(b, -3, -2).reshape(*lead, one, Wl * c)


def prepare_senngc_params(stacked):
    """stacked: dict with leading model axis M of per-lag weights.
       Returns block-diagonalized weights for the fused kernel."""
    wh = jnp.swapaxes(stacked["wh"], 1, 2)       # (M, E, W, H, H)
    bh = jnp.swapaxes(stacked["bh"], 1, 2)       # (M, E, W, 1, H)
    return dict(
        w1=_block_diag_lags(stacked["w1"]),      # (M, W*p, W*H)
        b1=_concat_lags_bias(stacked["b1"]),     # (M, 1, W*H)
        wh=_block_diag_lags(wh),                 # (M, E, W*H, W*H)
        bh=_concat_lags_bias(bh),                # (M, E, 1, W*H)
        wo=_block_diag_lags(stacked["wo"]),      # (M, W*H, W*p*p)
        bo=_concat_lags_bias(stacked["bo"]),     # (M, 1, W*p*p)
    )


# ----------------------------------------------------------------------------
# SENNGC forward over a stack of M independent models sharing shapes.
# ----------------------------------------------------------------------------
def senngc_forward_stacked(prepared, x_flat, window_size, num_vars):
    """prepared: block-diag weights (leading model axis M).
       x_flat: (M, N, W*p) lag-flattened windows.
       Returns preds (M, N, p), coeffs (M, N, W, p, p)."""
    M, N, WP = x_flat.shape
    W, p = window_size, num_vars
    assert WP == W * p
    pp = p * p
    WPP = W * pp
    WH = prepared["w1"].shape[-1]
    n_extra = prepared["wh"].shape[1]

    NT, N_pad = _choose_tile(M, N)
    if N_pad != N:
        x_flat = jnp.pad(x_flat, ((0, 0), (0, N_pad - N), (0, 0)))

    # Tiny constant selection matrices (VMEM-resident across the whole grid).
    a = jnp.arange(WP)
    b = jnp.arange(WPP)
    # R[k*p + j, k2*pp + i*p + j2] = (k == k2) & (j == j2)
    R = ((a[:, None] // p == b[None, :] // pp)
         & (a[:, None] % p == b[None, :] % p)).astype(jnp.float32)          # (W*p, W*pp)
    # GM[k*pp + i*p + j, i2] = (i == i2)
    GM = ((b[:, None] % pp) // p == jnp.arange(p)[None, :]).astype(jnp.float32)  # (W*pp, p)

    in_specs = [
        pl.BlockSpec((None, NT, WP), lambda m, n: (m, n, 0)),                # x tile
        pl.BlockSpec((None, WP, WH), lambda m, n: (m, 0, 0)),                # W1_bd (resident)
        pl.BlockSpec((None, 1, WH), lambda m, n: (m, 0, 0)),                 # b1_bd
    ]
    args = [x_flat, prepared["w1"], prepared["b1"]]
    if n_extra > 0:                                                          # skip dead DMA
        in_specs += [
            pl.BlockSpec((None, n_extra, WH, WH), lambda m, n: (m, 0, 0, 0)),
            pl.BlockSpec((None, n_extra, 1, WH), lambda m, n: (m, 0, 0, 0)),
        ]
        args += [prepared["wh"], prepared["bh"]]
    in_specs += [
        pl.BlockSpec((None, WH, WPP), lambda m, n: (m, 0, 0)),               # Wo_bd
        pl.BlockSpec((None, 1, WPP), lambda m, n: (m, 0, 0)),                # bo_bd
        pl.BlockSpec((WP, WPP), lambda m, n: (0, 0)),                        # R
        pl.BlockSpec((WPP, p), lambda m, n: (0, 0)),                         # GM
    ]
    args += [prepared["wo"], prepared["bo"], R, GM]

    kernel = functools.partial(_senngc_kernel, n_extra=n_extra)

    out = pl.pallas_call(
        kernel,
        out_shape=jax.ShapeDtypeStruct((M, N_pad, WPP + p), jnp.float32),
        grid_spec=pltpu.PrefetchScalarGridSpec(
            num_scalar_prefetch=0,
            grid=(M, N_pad // NT),
            in_specs=in_specs,
            out_specs=pl.BlockSpec((None, NT, WPP + p), lambda m, n: (m, n, 0)),
        ),
        compiler_params=pltpu.CompilerParams(
            dimension_semantics=("parallel", "parallel")),
    )(*args)

    coeffs = out[:, :N, :WPP].reshape(M, N, W, p, p)    # already in final layout
    preds = out[:, :N, WPP:]
    return preds, coeffs


def senngc_forward(params, winds):
    """Single-model convenience wrapper: per-lag params, winds (N, W, p)."""
    N, W, p = winds.shape
    prepared = prepare_senngc_params(stack_params([params]))
    preds, coeffs = senngc_forward_stacked(prepared, winds.reshape(N, W * p)[None], W, p)
    return preds[0], coeffs[0]


def senngc_reference(params, inputs):
    """Plain-JAX per-lag reference used only to sanity-check the kernel."""
    N, W, p = inputs.shape
    n_extra = params["wh"].shape[1]
    preds = jnp.zeros((N, p), jnp.float32)
    coeffs_list = []
    for k in range(W):
        xk = inputs[:, k, :]
        h = jnp.maximum(xk @ params["w1"][k] + params["b1"][k], 0.0)
        for l in range(n_extra):
            h = jnp.maximum(h @ params["wh"][k, l] + params["bh"][k, l], 0.0)
        c = (h @ params["wo"][k] + params["bo"][k]).reshape(N, p, p)
        coeffs_list.append(c)
        preds = preds + jnp.einsum("nij,nj->ni", c, xk)
    return preds, jnp.stack(coeffs_list, axis=1)


# ----------------------------------------------------------------------------
# AERCA forward (plain-JAX glue around the SENNGC Pallas kernels)
# ----------------------------------------------------------------------------
def compute_kl_divergence(us):
    # TODO(synk): compute_kl_divergence source not provided; assumed mean of the
    # closed-form KL(N(mean_i, std_i) || N(0, 1)) over variables (unbiased std).
    mu = jnp.mean(us, axis=0)
    std = jnp.std(us, axis=0, ddof=1)
    kl = jnp.log(1.0 / std) + (std ** 2 + mu ** 2) / 2.0 - 0.5
    return jnp.mean(kl)


def _lag_windows_flat(x, W, N):
    """x: (T, p) -> (N, W*p) where row n = concat(x[n], ..., x[n+W-1])."""
    return jnp.concatenate([x[k:k + N] for k in range(W)], axis=1)


def aerca_forward(params, x, *, window_size, add_u=True):
    """Replicates AERCA.forward(x, add_u).

    x: (T, num_vars) float32
    returns (nexts_hat, nexts, encoder_coeffs, decoder_coeffs, prev_coeffs, kl_div, us)
    """
    W = window_size
    T, p = x.shape

    enc_prepared = prepare_senngc_params(stack_params([params["encoder"]]))
    dec_prepared = prepare_senngc_params(
        stack_params([params["decoder"], params["decoder_prev"]]))

    # --- encoding: lag-shifted slices of the raw series (no (N, W+1, p) gather) ---
    N = T - W
    winds_flat = _lag_windows_flat(x, W, N)          # (N, W*p)
    nexts = x[W:]                                    # (N, p)
    enc_preds, enc_coeffs = senngc_forward_stacked(enc_prepared, winds_flat[None], W, p)
    enc_preds, enc_coeffs = enc_preds[0], enc_coeffs[0]
    us = enc_preds - nexts                           # (N, p)
    nexts_trim = nexts[W:]                           # (T-2W, p)
    kl_div = compute_kl_divergence(us)

    # --- decoding: decoder (on u windows) + decoder_prev (on x windows), fused ---
    Nd = N - W
    u_winds_flat = _lag_windows_flat(us, W, Nd)      # (Nd, W*p)
    u_next = us[W:]                                  # (Nd, p)
    dec_inputs = jnp.stack([u_winds_flat, winds_flat[:Nd]], axis=0)   # (2, Nd, W*p)
    dec_preds_all, dec_coeffs_all = senngc_forward_stacked(dec_prepared, dec_inputs, W, p)
    dec_preds, prev_preds = dec_preds_all[0], dec_preds_all[1]
    dec_coeffs, prev_coeffs = dec_coeffs_all[0], dec_coeffs_all[1]

    if add_u:
        nexts_hat = dec_preds + u_next + prev_preds
    else:
        nexts_hat = dec_preds + prev_preds

    return nexts_hat, nexts_trim, enc_coeffs, dec_coeffs, prev_coeffs, kl_div, us


# ----------------------------------------------------------------------------
# Deterministic parameter init (synthetic; shapes match SENNGC.__init__)
# ----------------------------------------------------------------------------
def init_senngc_params(key, num_vars, window_size, hidden, num_hidden_layers):
    p, W, H = num_vars, window_size, hidden
    n_extra = num_hidden_layers - 1              # may be 0 (zero-sized wh/bh)
    keys = jax.random.split(key, 6)

    def unif(k, shape, fan_in):
        bound = 1.0 / (fan_in ** 0.5)
        return jax.random.uniform(k, shape, jnp.float32, -bound, bound)

    return dict(
        w1=unif(keys[0], (W, p, H), p),
        b1=unif(keys[1], (W, 1, H), p),
        wh=unif(keys[2], (W, n_extra, H, H), H),
        bh=unif(keys[3], (W, n_extra, 1, H), H),
        wo=unif(keys[4], (W, H, p * p), H),
        bo=unif(keys[5], (W, 1, p * p), H),
    )


def init_aerca_params(key, num_vars, window_size, hidden, num_hidden_layers):
    k_enc, k_dec, k_prev = jax.random.split(key, 3)
    return dict(
        encoder=init_senngc_params(k_enc, num_vars, window_size, hidden, num_hidden_layers),
        decoder=init_senngc_params(k_dec, num_vars, window_size, hidden, num_hidden_layers),
        decoder_prev=init_senngc_params(k_prev, num_vars, window_size, hidden, num_hidden_layers),
    )


# ----------------------------------------------------------------------------
if __name__ == "__main__":
    num_vars = 4
    window_size = 3
    hidden_layer_size = 32
    num_hidden_layers = 2
    T = 64

    key = jax.random.PRNGKey(0)
    k_params, k_x = jax.random.split(key)
    params = init_aerca_params(k_params, num_vars, window_size,
                               hidden_layer_size, num_hidden_layers)
    x = jax.random.normal(k_x, (T, num_vars), jnp.float32)

    # Full AERCA forward (Pallas kernels inside), jitted end-to-end.
    forward = jax.jit(functools.partial(aerca_forward, window_size=window_size,
                                        add_u=True))
    outputs = jax.block_until_ready(forward(params, x))
    nexts_hat, nexts, enc_coeffs, dec_coeffs, prev_coeffs, kl_div, us = outputs

    # Shape checks (mirror the PyTorch semantics).
    W = window_size
    N_enc = T - W
    N_dec = T - 2 * W
    assert nexts_hat.shape == (N_dec, num_vars)
    assert nexts.shape == (N_dec, num_vars)
    assert enc_coeffs.shape == (N_enc, W, num_vars, num_vars)
    assert dec_coeffs.shape == (N_dec, W, num_vars, num_vars)
    assert prev_coeffs.shape == (N_dec, W, num_vars, num_vars)
    assert us.shape == (N_enc, num_vars)
    assert kl_div.shape == ()

    # Numerical checks of the Pallas SENNGC path against a plain-JAX reference.
    # Tolerance accounts for MXU default-precision (bf16-pass) f32 matmuls.
    tol = dict(rtol=1e-2, atol=1e-2)
    winds_ref = jnp.stack([x[k:k + N_enc] for k in range(W)], axis=1)   # (N_enc, W, p)
    nexts_ref = x[W:]

    preds_pl, coeffs_pl = senngc_forward(params["encoder"], winds_ref)
    preds_rf, coeffs_rf = senngc_reference(params["encoder"], winds_ref)
    assert jnp.allclose(preds_pl, preds_rf, **tol)
    assert jnp.allclose(coeffs_pl, coeffs_rf, **tol)
    assert jnp.allclose(enc_coeffs, coeffs_rf, **tol)

    us_rf = preds_rf - nexts_ref
    assert jnp.allclose(us, us_rf, **tol)
    assert jnp.allclose(nexts, nexts_ref[W:], **tol)

    # Fused decoder / decoder_prev path vs reference (built from the kernel's us
    # so the comparison isolates matmul rounding, not input drift).
    u_winds_ref = jnp.stack([us[k:k + N_dec] for k in range(W)], axis=1)
    u_next_ref = us[W:]
    dec_preds_rf, dec_coeffs_rf = senngc_reference(params["decoder"], u_winds_ref)
    prev_preds_rf, prev_coeffs_rf = senngc_reference(params["decoder_prev"],
                                                     winds_ref[:N_dec])
    nexts_hat_rf = dec_preds_rf + u_next_ref + prev_preds_rf
    assert jnp.allclose(dec_coeffs, dec_coeffs_rf, **tol)
    assert jnp.allclose(prev_coeffs, prev_coeffs_rf, **tol)
    assert jnp.allclose(nexts_hat, nexts_hat_rf, **tol)

    print("KERNEL_OK")
</pallas_src>

<mosaic_0001>
module attributes {stable_mosaic.version = 11 : i64} {
  func.func @_senngc_kernel(%arg0: i32, %arg1: i32, %arg2: memref<1x32x12xf32, #tpu.memory_space<vmem>>, %arg3: memref<1x12x96xf32, #tpu.memory_space<vmem>>, %arg4: memref<1x1x96xf32, #tpu.memory_space<vmem>>, %arg5: memref<1x1x96x96xf32, #tpu.memory_space<vmem>>, %arg6: memref<1x1x1x96xf32, #tpu.memory_space<vmem>>, %arg7: memref<1x96x48xf32, #tpu.memory_space<vmem>>, %arg8: memref<1x1x48xf32, #tpu.memory_space<vmem>>, %arg9: memref<12x48xf32, #tpu.memory_space<vmem>>, %arg10: memref<48x4xf32, #tpu.memory_space<vmem>>, %arg11: memref<1x32x52xf32, #tpu.memory_space<vmem>>) attributes {dimension_semantics = [#tpu.dimension_semantics<parallel>, #tpu.dimension_semantics<parallel>], iteration_bounds = array<i64: 1, 2>, scalar_prefetch = 0 : i64, scratch_operands = 0 : i64, tpu.core_type = #tpu.core_type<tc>, window_params = [{transform_indices = @transform_0, window_bounds = array<i64: 1, 32, 12>}, {transform_indices = @transform_1, window_bounds = array<i64: 1, 12, 96>}, {transform_indices = @transform_2, window_bounds = array<i64: 1, 1, 96>}, {transform_indices = @transform_3, window_bounds = array<i64: 1, 1, 96, 96>}, {transform_indices = @transform_4, window_bounds = array<i64: 1, 1, 1, 96>}, {transform_indices = @transform_5, window_bounds = array<i64: 1, 96, 48>}, {transform_indices = @transform_6, window_bounds = array<i64: 1, 1, 48>}, {pipeline_mode = #tpu.pipeline_mode<synchronous>, transform_indices = @transform_7, window_bounds = array<i64: 12, 48>}, {pipeline_mode = #tpu.pipeline_mode<synchronous>, transform_indices = @transform_8, window_bounds = array<i64: 48, 4>}, {transform_indices = @transform_9, window_bounds = array<i64: 1, 32, 52>}]} {
    %c0 = arith.constant 0 : index
    %c0_0 = arith.constant 0 : index
    %c0_1 = arith.constant 0 : index
    %0 = vector.load %arg2[%c0, %c0_0, %c0_1] : memref<1x32x12xf32, #tpu.memory_space<vmem>>, vector<1x32x12xf32>
    %1 = vector.shape_cast %0 : vector<1x32x12xf32> to vector<32x12xf32>
    %c0_2 = arith.constant 0 : index
    %c0_3 = arith.constant 0 : index
    %c0_4 = arith.constant 0 : index
    %2 = vector.load %arg3[%c0_2, %c0_3, %c0_4] : memref<1x12x96xf32, #tpu.memory_space<vmem>>, vector<1x12x96xf32>
    %3 = vector.shape_cast %2 : vector<1x12x96xf32> to vector<12x96xf32>
    %cst = arith.constant dense<0.000000e+00> : vector<32x96xf32>
    %4 = tpu.matmul %1, %3, %cst {dimension_numbers = #tpu.dot_dimension_numbers<[1], [0], [0], [1], [0, 0, 1, 1], [], []>} : vector<32x12xf32>, vector<12x96xf32>, vector<32x96xf32> -> vector<32x96xf32>
    %c0_5 = arith.constant 0 : index
    %c0_6 = arith.constant 0 : index
    %c0_7 = arith.constant 0 : index
    %5 = vector.load %arg4[%c0_5, %c0_6, %c0_7] : memref<1x1x96xf32, #tpu.memory_space<vmem>>, vector<1x1x96xf32>
    %6 = vector.shape_cast %5 : vector<1x1x96xf32> to vector<1x96xf32>
    %7 = vector.broadcast %6 : vector<1x96xf32> to vector<32x96xf32>
    %8 = arith.addf %4, %7 : vector<32x96xf32>
    %cst_8 = arith.constant 0.000000e+00 : f32
    %9 = vector.broadcast %cst_8 : f32 to vector<32x96xf32>
    %10 = arith.maximumf %8, %9 : vector<32x96xf32>
    %c0_9 = arith.constant 0 : index
    %c0_10 = arith.constant 0 : index
    %c0_11 = arith.constant 0 : index
    %c0_12 = arith.constant 0 : index
    %11 = vector.load %arg5[%c0_9, %c0_10, %c0_11, %c0_12] : memref<1x1x96x96xf32, #tpu.memory_space<vmem>>, vector<1x1x96x96xf32>
    %12 = vector.shape_cast %11 : vector<1x1x96x96xf32> to vector<96x96xf32>
    %cst_13 = arith.constant dense<0.000000e+00> : vector<32x96xf32>
    %13 = tpu.matmul %10, %12, %cst_13 {dimension_numbers = #tpu.dot_dimension_numbers<[1], [0], [0], [1], [0, 0, 1, 1], [], []>} : vector<32x96xf32>, vector<96x96xf32>, vector<32x96xf32> -> vector<32x96xf32>
    %c0_14 = arith.constant 0 : index
    %c0_15 = arith.constant 0 : index
    %c0_16 = arith.constant 0 : index
    %c0_17 = arith.constant 0 : index
    %14 = vector.load %arg6[%c0_14, %c0_15, %c0_16, %c0_17] : memref<1x1x1x96xf32, #tpu.memory_space<vmem>>, vector<1x1x1x96xf32>
    %15 = vector.shape_cast %14 : vector<1x1x1x96xf32> to vector<1x96xf32>
    %16 = vector.broadcast %15 : vector<1x96xf32> to vector<32x96xf32>
    %17 = arith.addf %13, %16 : vector<32x96xf32>
    %cst_18 = arith.constant 0.000000e+00 : f32
    %18 = vector.broadcast %cst_18 : f32 to vector<32x96xf32>
    %19 = arith.maximumf %17, %18 : vector<32x96xf32>
    %c0_19 = arith.constant 0 : index
    %c0_20 = arith.constant 0 : index
    %c0_21 = arith.constant 0 : index
    %20 = vector.load %arg7[%c0_19, %c0_20, %c0_21] : memref<1x96x48xf32, #tpu.memory_space<vmem>>, vector<1x96x48xf32>
    %21 = vector.shape_cast %20 : vector<1x96x48xf32> to vector<96x48xf32>
    %cst_22 = arith.constant dense<0.000000e+00> : vector<32x48xf32>
    %22 = tpu.matmul %19, %21, %cst_22 {dimension_numbers = #tpu.dot_dimension_numbers<[1], [0], [0], [1], [0, 0, 1, 1], [], []>} : vector<32x96xf32>, vector<96x48xf32>, vector<32x48xf32> -> vector<32x48xf32>
    %c0_23 = arith.constant 0 : index
    %c0_24 = arith.constant 0 : index
    %c0_25 = arith.constant 0 : index
    %23 = vector.load %arg8[%c0_23, %c0_24, %c0_25] : memref<1x1x48xf32, #tpu.memory_space<vmem>>, vector<1x1x48xf32>
    %24 = vector.shape_cast %23 : vector<1x1x48xf32> to vector<1x48xf32>
    %25 = vector.broadcast %24 : vector<1x48xf32> to vector<32x48xf32>
    %26 = arith.addf %22, %25 : vector<32x48xf32>
    %c0_26 = arith.constant 0 : index
    %c0_27 = arith.constant 0 : index
    %27 = vector.load %arg9[%c0_26, %c0_27] : memref<12x48xf32, #tpu.memory_space<vmem>>, vector<12x48xf32>
    %cst_28 = arith.constant dense<0.000000e+00> : vector<32x48xf32>
    %28 = tpu.matmul %1, %27, %cst_28 {dimension_numbers = #tpu.dot_dimension_numbers<[1], [0], [0], [1], [0, 0, 1, 1], [], []>} : vector<32x12xf32>, vector<12x48xf32>, vector<32x48xf32> -> vector<32x48xf32>
    %29 = arith.mulf %26, %28 : vector<32x48xf32>
    %c0_29 = arith.constant 0 : index
    %c0_30 = arith.constant 0 : index
    %30 = vector.load %arg10[%c0_29, %c0_30] : memref<48x4xf32, #tpu.memory_space<vmem>>, vector<48x4xf32>
    %cst_31 = arith.constant dense<0.000000e+00> : vector<32x4xf32>
    %31 = tpu.matmul %29, %30, %cst_31 {dimension_numbers = #tpu.dot_dimension_numbers<[1], [0], [0], [1], [0, 0, 1, 1], [], []>} : vector<32x48xf32>, vector<48x4xf32>, vector<32x4xf32> -> vector<32x4xf32>
    %32 = tpu.concatenate %26, %31 in 1 : vector<32x48xf32>, vector<32x4xf32> -> vector<32x52xf32>
    %c0_32 = arith.constant 0 : index
    %c0_33 = arith.constant 0 : index
    %c0_34 = arith.constant 0 : index
    %33 = vector.load %arg11[%c0_32, %c0_33, %c0_34] : memref<1x32x52xf32, #tpu.memory_space<vmem>>, vector<1x32x52xf32>
    %34 = vector.shape_cast %33 : vector<1x32x52xf32> to vector<32x52xf32>
    %35 = vector.shape_cast %32 : vector<32x52xf32> to vector<1x32x52xf32>
    tpu.vector_store %arg11[%c0_32, %c0_33, %c0_34], %35 {strides = array<i32>} : memref<1x32x52xf32, #tpu.memory_space<vmem>>, vector<1x32x52xf32>,
    return
  }
  func.func @transform_0(%arg0: i32, %arg1: i32) -> (i32, i32, i32) {
    %c0_i32 = arith.constant 0 : i32
    %c0_i32_0 = arith.constant 0 : i32
    return %arg0, %arg1, %c0_i32 : i32, i32, i32
  }
  func.func @transform_1(%arg0: i32, %arg1: i32) -> (i32, i32, i32) {
    %c0_i32 = arith.constant 0 : i32
    %c0_i32_0 = arith.constant 0 : i32
    %c0_i32_1 = arith.constant 0 : i32
    return %arg0, %c0_i32, %c0_i32_0 : i32, i32, i32
  }
  func.func @transform_2(%arg0: i32, %arg1: i32) -> (i32, i32, i32) {
    %c0_i32 = arith.constant 0 : i32
    %c0_i32_0 = arith.constant 0 : i32
    %c0_i32_1 = arith.constant 0 : i32
    return %arg0, %c0_i32, %c0_i32_0 : i32, i32, i32
  }
  func.func @transform_3(%arg0: i32, %arg1: i32) -> (i32, i32, i32, i32) {
    %c0_i32 = arith.constant 0 : i32
    %c0_i32_0 = arith.constant 0 : i32
    %c0_i32_1 = arith.constant 0 : i32
    %c0_i32_2 = arith.constant 0 : i32
    return %arg0, %c0_i32, %c0_i32_0, %c0_i32_1 : i32, i32, i32, i32
  }
  func.func @transform_4(%arg0: i32, %arg1: i32) -> (i32, i32, i32, i32) {
    %c0_i32 = arith.constant 0 : i32
    %c0_i32_0 = arith.constant 0 : i32
    %c0_i32_1 = arith.constant 0 : i32
    %c0_i32_2 = arith.constant 0 : i32
    return %arg0, %c0_i32, %c0_i32_0, %c0_i32_1 : i32, i32, i32, i32
  }
  func.func @transform_5(%arg0: i32, %arg1: i32) -> (i32, i32, i32) {
    %c0_i32 = arith.constant 0 : i32
    %c0_i32_0 = arith.constant 0 : i32
    %c0_i32_1 = arith.constant 0 : i32
    return %arg0, %c0_i32, %c0_i32_0 : i32, i32, i32
  }
  func.func @transform_6(%arg0: i32, %arg1: i32) -> (i32, i32, i32) {
    %c0_i32 = arith.constant 0 : i32
    %c0_i32_0 = arith.constant 0 : i32
    %c0_i32_1 = arith.constant 0 : i32
    return %arg0, %c0_i32, %c0_i32_0 : i32, i32, i32
  }
  func.func @transform_7(%arg0: i32, %arg1: i32) -> (i32, i32) {
    %c0_i32 = arith.constant 0 : i32
    %c0_i32_0 = arith.constant 0 : i32
    %c0_i32_1 = arith.constant 0 : i32
    return %c0_i32, %c0_i32_0 : i32, i32
  }
  func.func @transform_8(%arg0: i32, %arg1: i32) -> (i32, i32) {
    %c0_i32 = arith.constant 0 : i32
    %c0_i32_0 = arith.constant 0 : i32
    %c0_i32_1 = arith.constant 0 : i32
    return %c0_i32, %c0_i32_0 : i32, i32
  }
  func.func @transform_9(%arg0: i32, %arg1: i32) -> (i32, i32, i32) {
    %c0_i32 = arith.constant 0 : i32
    %c0_i32_0 = arith.constant 0 : i32
    return %arg0, %arg1, %c0_i32 : i32, i32, i32
  }
}

module attributes {stable_mosaic.version = 11 : i64} {
  func.func @_senngc_kernel(%arg0: i32, %arg1: i32, %arg2: memref<1x64x12xf32, #tpu.memory_space<vmem>>, %arg3: memref<1x12x96xf32, #tpu.memory_space<vmem>>, %arg4: memref<1x1x96xf32, #tpu.memory_space<vmem>>, %arg5: memref<1x1x96x96xf32, #tpu.memory_space<vmem>>, %arg6: memref<1x1x1x96xf32, #tpu.memory_space<vmem>>, %arg7: memref<1x96x48xf32, #tpu.memory_space<vmem>>, %arg8: memref<1x1x48xf32, #tpu.memory_space<vmem>>, %arg9: memref<12x48xf32, #tpu.memory_space<vmem>>, %arg10: memref<48x4xf32, #tpu.memory_space<vmem>>, %arg11: memref<1x64x52xf32, #tpu.memory_space<vmem>>) attributes {dimension_semantics = [#tpu.dimension_semantics<parallel>, #tpu.dimension_semantics<parallel>], iteration_bounds = array<i64: 2, 1>, scalar_prefetch = 0 : i64, scratch_operands = 0 : i64, tpu.core_type = #tpu.core_type<tc>, window_params = [{transform_indices = @transform_0, window_bounds = array<i64: 1, 64, 12>}, {transform_indices = @transform_1, window_bounds = array<i64: 1, 12, 96>}, {transform_indices = @transform_2, window_bounds = array<i64: 1, 1, 96>}, {transform_indices = @transform_3, window_bounds = array<i64: 1, 1, 96, 96>}, {transform_indices = @transform_4, window_bounds = array<i64: 1, 1, 1, 96>}, {transform_indices = @transform_5, window_bounds = array<i64: 1, 96, 48>}, {transform_indices = @transform_6, window_bounds = array<i64: 1, 1, 48>}, {pipeline_mode = #tpu.pipeline_mode<synchronous>, transform_indices = @transform_7, window_bounds = array<i64: 12, 48>}, {pipeline_mode = #tpu.pipeline_mode<synchronous>, transform_indices = @transform_8, window_bounds = array<i64: 48, 4>}, {transform_indices = @transform_9, window_bounds = array<i64: 1, 64, 52>}]} {
    %c0 = arith.constant 0 : index
    %c0_0 = arith.constant 0 : index
    %c0_1 = arith.constant 0 : index
    %0 = vector.load %arg2[%c0, %c0_0, %c0_1] : memref<1x64x12xf32, #tpu.memory_space<vmem>>, vector<1x64x12xf32>
    %1 = vector.shape_cast %0 : vector<1x64x12xf32> to vector<64x12xf32>
    %c0_2 = arith.constant 0 : index
    %c0_3 = arith.constant 0 : index
    %c0_4 = arith.constant 0 : index
    %2 = vector.load %arg3[%c0_2, %c0_3, %c0_4] : memref<1x12x96xf32, #tpu.memory_space<vmem>>, vector<1x12x96xf32>
    %3 = vector.shape_cast %2 : vector<1x12x96xf32> to vector<12x96xf32>
    %cst = arith.constant dense<0.000000e+00> : vector<64x96xf32>
    %4 = tpu.matmul %1, %3, %cst {dimension_numbers = #tpu.dot_dimension_numbers<[1], [0], [0], [1], [0, 0, 1, 1], [], []>} : vector<64x12xf32>, vector<12x96xf32>, vector<64x96xf32> -> vector<64x96xf32>
    %c0_5 = arith.constant 0 : index
    %c0_6 = arith.constant 0 : index
    %c0_7 = arith.constant 0 : index
    %5 = vector.load %arg4[%c0_5, %c0_6, %c0_7] : memref<1x1x96xf32, #tpu.memory_space<vmem>>, vector<1x1x96xf32>
    %6 = vector.shape_cast %5 : vector<1x1x96xf32> to vector<1x96xf32>
    %7 = vector.broadcast %6 : vector<1x96xf32> to vector<64x96xf32>
    %8 = arith.addf %4, %7 : vector<64x96xf32>
    %cst_8 = arith.constant 0.000000e+00 : f32
    %9 = vector.broadcast %cst_8 : f32 to vector<64x96xf32>
    %10 = arith.maximumf %8, %9 : vector<64x96xf32>
    %c0_9 = arith.constant 0 : index
    %c0_10 = arith.constant 0 : index
    %c0_11 = arith.constant 0 : index
    %c0_12 = arith.constant 0 : index
    %11 = vector.load %arg5[%c0_9, %c0_10, %c0_11, %c0_12] : memref<1x1x96x96xf32, #tpu.memory_space<vmem>>, vector<1x1x96x96xf32>
    %12 = vector.shape_cast %11 : vector<1x1x96x96xf32> to vector<96x96xf32>
    %cst_13 = arith.constant dense<0.000000e+00> : vector<64x96xf32>
    %13 = tpu.matmul %10, %12, %cst_13 {dimension_numbers = #tpu.dot_dimension_numbers<[1], [0], [0], [1], [0, 0, 1, 1], [], []>} : vector<64x96xf32>, vector<96x96xf32>, vector<64x96xf32> -> vector<64x96xf32>
    %c0_14 = arith.constant 0 : index
    %c0_15 = arith.constant 0 : index
    %c0_16 = arith.constant 0 : index
    %c0_17 = arith.constant 0 : index
    %14 = vector.load %arg6[%c0_14, %c0_15, %c0_16, %c0_17] : memref<1x1x1x96xf32, #tpu.memory_space<vmem>>, vector<1x1x1x96xf32>
    %15 = vector.shape_cast %14 : vector<1x1x1x96xf32> to vector<1x96xf32>
    %16 = vector.broadcast %15 : vector<1x96xf32> to vector<64x96xf32>
    %17 = arith.addf %13, %16 : vector<64x96xf32>
    %cst_18 = arith.constant 0.000000e+00 : f32
    %18 = vector.broadcast %cst_18 : f32 to vector<64x96xf32>
    %19 = arith.maximumf %17, %18 : vector<64x96xf32>
    %c0_19 = arith.constant 0 : index
    %c0_20 = arith.constant 0 : index
    %c0_21 = arith.constant 0 : index
    %20 = vector.load %arg7[%c0_19, %c0_20, %c0_21] : memref<1x96x48xf32, #tpu.memory_space<vmem>>, vector<1x96x48xf32>
    %21 = vector.shape_cast %20 : vector<1x96x48xf32> to vector<96x48xf32>
    %cst_22 = arith.constant dense<0.000000e+00> : vector<64x48xf32>
    %22 = tpu.matmul %19, %21, %cst_22 {dimension_numbers = #tpu.dot_dimension_numbers<[1], [0], [0], [1], [0, 0, 1, 1], [], []>} : vector<64x96xf32>, vector<96x48xf32>, vector<64x48xf32> -> vector<64x48xf32>
    %c0_23 = arith.constant 0 : index
    %c0_24 = arith.constant 0 : index
    %c0_25 = arith.constant 0 : index
    %23 = vector.load %arg8[%c0_23, %c0_24, %c0_25] : memref<1x1x48xf32, #tpu.memory_space<vmem>>, vector<1x1x48xf32>
    %24 = vector.shape_cast %23 : vector<1x1x48xf32> to vector<1x48xf32>
    %25 = vector.broadcast %24 : vector<1x48xf32> to vector<64x48xf32>
    %26 = arith.addf %22, %25 : vector<64x48xf32>
    %c0_26 = arith.constant 0 : index
    %c0_27 = arith.constant 0 : index
    %27 = vector.load %arg9[%c0_26, %c0_27] : memref<12x48xf32, #tpu.memory_space<vmem>>, vector<12x48xf32>
    %cst_28 = arith.constant dense<0.000000e+00> : vector<64x48xf32>
    %28 = tpu.matmul %1, %27, %cst_28 {dimension_numbers = #tpu.dot_dimension_numbers<[1], [0], [0], [1], [0, 0, 1, 1], [], []>} : vector<64x12xf32>, vector<12x48xf32>, vector<64x48xf32> -> vector<64x48xf32>
    %29 = arith.mulf %26, %28 : vector<64x48xf32>
    %c0_29 = arith.constant 0 : index
    %c0_30 = arith.constant 0 : index
    %30 = vector.load %arg10[%c0_29, %c0_30] : memref<48x4xf32, #tpu.memory_space<vmem>>, vector<48x4xf32>
    %cst_31 = arith.constant dense<0.000000e+00> : vector<64x4xf32>
    %31 = tpu.matmul %29, %30, %cst_31 {dimension_numbers = #tpu.dot_dimension_numbers<[1], [0], [0], [1], [0, 0, 1, 1], [], []>} : vector<64x48xf32>, vector<48x4xf32>, vector<64x4xf32> -> vector<64x4xf32>
    %32 = tpu.concatenate %26, %31 in 1 : vector<64x48xf32>, vector<64x4xf32> -> vector<64x52xf32>
    %c0_32 = arith.constant 0 : index
    %c0_33 = arith.constant 0 : index
    %c0_34 = arith.constant 0 : index
    %33 = vector.load %arg11[%c0_32, %c0_33, %c0_34] : memref<1x64x52xf32, #tpu.memory_space<vmem>>, vector<1x64x52xf32>
    %34 = vector.shape_cast %33 : vector<1x64x52xf32> to vector<64x52xf32>
    %35 = vector.shape_cast %32 : vector<64x52xf32> to vector<1x64x52xf32>
    tpu.vector_store %arg11[%c0_32, %c0_33, %c0_34], %35 {strides = array<i32>} : memref<1x64x52xf32, #tpu.memory_space<vmem>>, vector<1x64x52xf32>,
    return
  }
  func.func @transform_0(%arg0: i32, %arg1: i32) -> (i32, i32, i32) {
    %c0_i32 = arith.constant 0 : i32
    %c0_i32_0 = arith.constant 0 : i32
    return %arg0, %arg1, %c0_i32 : i32, i32, i32
  }
  func.func @transform_1(%arg0: i32, %arg1: i32) -> (i32, i32, i32) {
    %c0_i32 = arith.constant 0 : i32
    %c0_i32_0 = arith.constant 0 : i32
    %c0_i32_1 = arith.constant 0 : i32
    return %arg0, %c0_i32, %c0_i32_0 : i32, i32, i32
  }
  func.func @transform_2(%arg0: i32, %arg1: i32) -> (i32, i32, i32) {
    %c0_i32 = arith.constant 0 : i32
    %c0_i32_0 = arith.constant 0 : i32
    %c0_i32_1 = arith.constant 0 : i32
    return %arg0, %c0_i32, %c0_i32_0 : i32, i32, i32
  }
  func.func @transform_3(%arg0: i32, %arg1: i32) -> (i32, i32, i32, i32) {
    %c0_i32 = arith.constant 0 : i32
    %c0_i32_0 = arith.constant 0 : i32
    %c0_i32_1 = arith.constant 0 : i32
    %c0_i32_2 = arith.constant 0 : i32
    return %arg0, %c0_i32, %c0_i32_0, %c0_i32_1 : i32, i32, i32, i32
  }
  func.func @transform_4(%arg0: i32, %arg1: i32) -> (i32, i32, i32, i32) {
    %c0_i32 = arith.constant 0 : i32
    %c0_i32_0 = arith.constant 0 : i32
    %c0_i32_1 = arith.constant 0 : i32
    %c0_i32_2 = arith.constant 0 : i32
    return %arg0, %c0_i32, %c0_i32_0, %c0_i32_1 : i32, i32, i32, i32
  }
  func.func @transform_5(%arg0: i32, %arg1: i32) -> (i32, i32, i32) {
    %c0_i32 = arith.constant 0 : i32
    %c0_i32_0 = arith.constant 0 : i32
    %c0_i32_1 = arith.constant 0 : i32
    return %arg0, %c0_i32, %c0_i32_0 : i32, i32, i32
  }
  func.func @transform_6(%arg0: i32, %arg1: i32) -> (i32, i32, i32) {
    %c0_i32 = arith.constant 0 : i32
    %c0_i32_0 = arith.constant 0 : i32
    %c0_i32_1 = arith.constant 0 : i32
    return %arg0, %c0_i32, %c0_i32_0 : i32, i32, i32
  }
  func.func @transform_7(%arg0: i32, %arg1: i32) -> (i32, i32) {
    %c0_i32 = arith.constant 0 : i32
    %c0_i32_0 = arith.constant 0 : i32
    %c0_i32_1 = arith.constant 0 : i32
    return %c0_i32, %c0_i32_0 : i32, i32
  }
  func.func @transform_8(%arg0: i32, %arg1: i32) -> (i32, i32) {
    %c0_i32 = arith.constant 0 : i32
    %c0_i32_0 = arith.constant 0 : i32
    %c0_i32_1 = arith.constant 0 : i32
    return %c0_i32, %c0_i32_0 : i32, i32
  }
  func.func @transform_9(%arg0: i32, %arg1: i32) -> (i32, i32, i32) {
    %c0_i32 = arith.constant 0 : i32
    %c0_i32_0 = arith.constant 0 : i32
    return %arg0, %arg1, %c0_i32 : i32, i32, i32
  }
}

</mosaic_0001>

<llo_original>
// kernel: aerca_forward.2
$region0: #{aerca_forward.2}
  #allocation0 [shape = 'u32[]', space=smem, size = 0x4, offset = 0x4, fixed_abs, tag = 'smem constant byte address 0x4 - core index']
  #allocation1 [shape = 'u32[144,128]{1,0:T(1,128)}', space=vmem, size = 0x12000, scoped, tag = 'internal scratch']
  %s0 = inlined_call_operand.vmem [shape: f32[1,64,12], index: 0, kind: input, shape index: {}]
  %s1 = inlined_call_operand.vmem [shape: f32[1,12,96], index: 1, kind: input, shape index: {}]
  %s2 = inlined_call_operand.vmem [shape: f32[1,1,96], index: 2, kind: input, shape index: {}]
  %s3 = inlined_call_operand.vmem [shape: f32[1,1,96,96], index: 3, kind: input, shape index: {}]
  %s4 = inlined_call_operand.vmem [shape: f32[1,1,1,96], index: 4, kind: input, shape index: {}]
  %s5 = inlined_call_operand.vmem [shape: f32[1,96,48], index: 5, kind: input, shape index: {}]
  %s6 = inlined_call_operand.vmem [shape: f32[1,1,48], index: 6, kind: input, shape index: {}]
  %s7 = inlined_call_operand.vmem [shape: f32[12,48], index: 7, kind: input, shape index: {}]
  %s8 = inlined_call_operand.vmem [shape: f32[48,4], index: 8, kind: input, shape index: {}]
  %s9 = inlined_call_operand.vmem [shape: f32[1,64,52], index: 9, kind: output, shape index: {}]
  %s10 = sld [smem:[#allocation0]]
  $region69: #{aerca_forward.2} parent=0
    _
  %s12 = ssub.s32 1, %s10
  %s13 = scalar_select 0, %s12, %s10
  loop: start=0, step=1, limit=4
  $region2: #{aerca_forward.2} parent=0 // loop_pre_header
    _
  $region3: #{aerca_forward.2} parent=0 // loop_header
    %s15 = sphi 0, %s19
    %p16 = scmp.ge.s32.totalorder %s15, 4
    %s22 = sphi 0, %s34
    %s23 = sphi 0, %s30
    %s24 = sphi 0, %s22
    %s25 = sphi 0, %s23
    %s26 = sphi 0, %s24
    %s27 = sphi 0, %s25
    %s39 = sphi 0, %s41
    %s42 = sphi 0, %s39
    %s43 = sphi 0, %s42
    %s59 = sphi 0, %s43
    %s65 = sphi 0, %s67
    %s68 = sphi 0, %s65
    %s69 = sphi 0, %s68
    %s85 = sphi 0, %s69
    %s91 = sphi 0, %s93
    %s94 = sphi 0, %s91
    %s95 = sphi 0, %s94
    %s111 = sphi 0, %s95
    %s117 = sphi 0, %s119
    %s120 = sphi 0, %s117
    %s121 = sphi 0, %s120
    %s137 = sphi 0, %s121
    %s143 = sphi 0, %s145
    %s146 = sphi 0, %s143
    %s147 = sphi 0, %s146
    %s163 = sphi 0, %s147
    %s169 = sphi 0, %s171
    %s172 = sphi 0, %s169
    %s173 = sphi 0, %s172
    %s189 = sphi 0, %s173
    %s195 = sphi 0, %s197
    %s198 = sphi 0, %s195
    %s199 = sphi 0, %s198
    %s215 = sphi 0, %s199
    %s219 = sphi 0, %s219
    %s221 = sphi 0, %s219
    %s222 = sphi 0, %s221
    %s236 = sphi 0, %s222
    %s240 = sphi 0, %s240
    %s242 = sphi 0, %s240
    %s243 = sphi 0, %s242
    %s257 = sphi 0, %s243
    %s265 = sphi 0, %s267
    %s268 = sphi 0, %s265
    %s269 = sphi 0, %s268
    %s285 = sphi 0, %s269
  $region4: #{aerca_forward.2} parent=0 // loop_header_branch
    %18 = sbr.rel (%p16) target = $region8
  $region5: #{aerca_forward.2} parent=0 // loop_body
    %s20 = ssub.s32 %s15, 1
    %s21 = ssub.s32 %s15, 2
    %s28 = sadd.s32 1, %s23
    %p29 = scmp.ge.s32.totalorder %s28, 2
    %s30 = scalar_select %p29, 0, %s28
    %s31 = sadd.s32 1, %s22
    %s32 = scalar_select %p29, %s31, %s22
    %p33 = scmp.ge.s32.totalorder %s32, 1
    %s34 = scalar_select %p33, 0, %s32
    %s35 = ssub.s32 %s22, %s34
    %s36 = ssub.s32 %s23, %s30
    %s37 = sor.u32 %s35, %s36
    %p38 = scmp.eq.s32.totalorder %s37, 0
    %s40 = sadd.s32 %s39, 1
    %s41 = scalar_select %p38, %s39, %s40
    %p44 = pneg %p38
    %p45 = scmp.eq.s32.totalorder %s15, 1
    %p46 = por %p44, %p45
    %p47 = scmp.ne.s32.totalorder %s39, %s42
    %p48 = scmp.eq.s32.totalorder %s15, 0
    %p49 = por %p47, %p48
    %p50 = scmp.ne.s32.totalorder %s39, %s42
    %p51 = scmp.eq.s32.totalorder %s20, 1
    %p52 = por %p50, %p51
    %p53 = scmp.ne.s32.totalorder %s42, %s43
    %p54 = scmp.eq.s32.totalorder %s20, 0
    %p55 = por %p53, %p54
    %p56 = scmp.ne.s32.totalorder %s42, %s43
    %p57 = scmp.eq.s32.totalorder %s21, 1
    %p58 = por %p56, %p57
    %p60 = scmp.ne.s32.totalorder %s43, %s59
    %p61 = scmp.eq.s32.totalorder %s21, 0
    %p62 = por %p60, %p61
    %s63 = ssub.s32 %s22, %s34
    %p64 = scmp.eq.s32.totalorder %s63, 0
    %s66 = sadd.s32 %s65, 1
    %s67 = scalar_select %p64, %s65, %s66
    %p70 = pneg %p64
    %p71 = scmp.eq.s32.totalorder %s15, 1
    %p72 = por %p70, %p71
    %p73 = scmp.ne.s32.totalorder %s65, %s68
    %p74 = scmp.eq.s32.totalorder %s15, 0
    %p75 = por %p73, %p74
    %p76 = scmp.ne.s32.totalorder %s65, %s68
    %p77 = scmp.eq.s32.totalorder %s20, 1
    %p78 = por %p76, %p77
    %p79 = scmp.ne.s32.totalorder %s68, %s69
    %p80 = scmp.eq.s32.totalorder %s20, 0
    %p81 = por %p79, %p80
    %p82 = scmp.ne.s32.totalorder %s68, %s69
    %p83 = scmp.eq.s32.totalorder %s21, 1
    %p84 = por %p82, %p83
    %p86 = scmp.ne.s32.totalorder %s69, %s85
    %p87 = scmp.eq.s32.totalorder %s21, 0
    %p88 = por %p86, %p87
    %s89 = ssub.s32 %s22, %s34
    %p90 = scmp.eq.s32.totalorder %s89, 0
    %s92 = sadd.s32 %s91, 1
    %s93 = scalar_select %p90, %s91, %s92
    %p96 = pneg %p90
    %p97 = scmp.eq.s32.totalorder %s15, 1
    %p98 = por %p96, %p97
    %p99 = scmp.ne.s32.totalorder %s91, %s94
    %p100 = scmp.eq.s32.totalorder %s15, 0
    %p101 = por %p99, %p100
    %p102 = scmp.ne.s32.totalorder %s91, %s94
    %p103 = scmp.eq.s32.totalorder %s20, 1
    %p104 = por %p102, %p103
    %p105 = scmp.ne.s32.totalorder %s94, %s95
    %p106 = scmp.eq.s32.totalorder %s20, 0
    %p107 = por %p105, %p106
    %p108 = scmp.ne.s32.totalorder %s94, %s95
    %p109 = scmp.eq.s32.totalorder %s21, 1
    %p110 = por %p108, %p109
    %p112 = scmp.ne.s32.totalorder %s95, %s111
    %p113 = scmp.eq.s32.totalorder %s21, 0
    %p114 = por %p112, %p113
    %s115 = ssub.s32 %s22, %s34
    %p116 = scmp.eq.s32.totalorder %s115, 0
    %s118 = sadd.s32 %s117, 1
    %s119 = scalar_select %p116, %s117, %s118
    %p122 = pneg %p116
    %p123 = scmp.eq.s32.totalorder %s15, 1
    %p124 = por %p122, %p123
    %p125 = scmp.ne.s32.totalorder %s117, %s120
    %p126 = scmp.eq.s32.totalorder %s15, 0
    %p127 = por %p125, %p126
    %p128 = scmp.ne.s32.totalorder %s117, %s120
    %p129 = scmp.eq.s32.totalorder %s20, 1
    %p130 = por %p128, %p129
    %p131 = scmp.ne.s32.totalorder %s120, %s121
    %p132 = scmp.eq.s32.totalorder %s20, 0
    %p133 = por %p131, %p132
    %p134 = scmp.ne.s32.totalorder %s120, %s121
    %p135 = scmp.eq.s32.totalorder %s21, 1
    %p136 = por %p134, %p135
    %p138 = scmp.ne.s32.totalorder %s121, %s137
    %p139 = scmp.eq.s32.totalorder %s21, 0
    %p140 = por %p138, %p139
    %s141 = ssub.s32 %s22, %s34
    %p142 = scmp.eq.s32.totalorder %s141, 0
    %s144 = sadd.s32 %s143, 1
    %s145 = scalar_select %p142, %s143, %s144
    %p148 = pneg %p142
    %p149 = scmp.eq.s32.totalorder %s15, 1
    %p150 = por %p148, %p149
    %p151 = scmp.ne.s32.totalorder %s143, %s146
    %p152 = scmp.eq.s32.totalorder %s15, 0
    %p153 = por %p151, %p152
    %p154 = scmp.ne.s32.totalorder %s143, %s146
    %p155 = scmp.eq.s32.totalorder %s20, 1
    %p156 = por %p154, %p155
    %p157 = scmp.ne.s32.totalorder %s146, %s147
    %p158 = scmp.eq.s32.totalorder %s20, 0
    %p159 = por %p157, %p158
    %p160 = scmp.ne.s32.totalorder %s146, %s147
    %p161 = scmp.eq.s32.totalorder %s21, 1
    %p162 = por %p160, %p161
    %p164 = scmp.ne.s32.totalorder %s147, %s163
    %p165 = scmp.eq.s32.totalorder %s21, 0
    %p166 = por %p164, %p165
    %s167 = ssub.s32 %s22, %s34
    %p168 = scmp.eq.s32.totalorder %s167, 0
    %s170 = sadd.s32 %s169, 1
    %s171 = scalar_select %p168, %s169, %s170
    %p174 = pneg %p168
    %p175 = scmp.eq.s32.totalorder %s15, 1
    %p176 = por %p174, %p175
    %p177 = scmp.ne.s32.totalorder %s169, %s172
    %p178 = scmp.eq.s32.totalorder %s15, 0
    %p179 = por %p177, %p178
    %p180 = scmp.ne.s32.totalorder %s169, %s172
    %p181 = scmp.eq.s32.totalorder %s20, 1
    %p182 = por %p180, %p181
    %p183 = scmp.ne.s32.totalorder %s172, %s173
    %p184 = scmp.eq.s32.totalorder %s20, 0
    %p185 = por %p183, %p184
    %p186 = scmp.ne.s32.totalorder %s172, %s173
    %p187 = scmp.eq.s32.totalorder %s21, 1
    %p188 = por %p186, %p187
    %p190 = scmp.ne.s32.totalorder %s173, %s189
    %p191 = scmp.eq.s32.totalorder %s21, 0
    %p192 = por %p190, %p191
    %s193 = ssub.s32 %s22, %s34
    %p194 = scmp.eq.s32.totalorder %s193, 0
    %s196 = sadd.s32 %s195, 1
    %s197 = scalar_select %p194, %s195, %s196
    %p200 = pneg %p194
    %p201 = scmp.eq.s32.totalorder %s15, 1
    %p202 = por %p200, %p201
    %p203 = scmp.ne.s32.totalorder %s195, %s198
    %p204 = scmp.eq.s32.totalorder %s15, 0
    %p205 = por %p203, %p204
    %p206 = scmp.ne.s32.totalorder %s195, %s198
    %p207 = scmp.eq.s32.totalorder %s20, 1
    %p208 = por %p206, %p207
    %p209 = scmp.ne.s32.totalorder %s198, %s199
    %p210 = scmp.eq.s32.totalorder %s20, 0
    %p211 = por %p209, %p210
    %p212 = scmp.ne.s32.totalorder %s198, %s199
    %p213 = scmp.eq.s32.totalorder %s21, 1
    %p214 = por %p212, %p213
    %p216 = scmp.ne.s32.totalorder %s199, %s215
    %p217 = scmp.eq.s32.totalorder %s21, 0
    %p218 = por %p216, %p217
    %s220 = sadd.s32 %s219, 1
    %p223 = scmp.eq.s32.totalorder %s15, 1
    %p224 = scmp.ne.s32.totalorder %s219, %s221
    %p225 = scmp.eq.s32.totalorder %s15, 0
    %p226 = por %p224, %p225
    %p227 = scmp.ne.s32.totalorder %s219, %s221
    %p228 = scmp.eq.s32.totalorder %s20, 1
    %p229 = por %p227, %p228
    %p230 = scmp.ne.s32.totalorder %s221, %s222
    %p231 = scmp.eq.s32.totalorder %s20, 0
    %p232 = por %p230, %p231
    %p233 = scmp.ne.s32.totalorder %s221, %s222
    %p234 = scmp.eq.s32.totalorder %s21, 1
    %p235 = por %p233, %p234
    %p237 = scmp.ne.s32.totalorder %s222, %s236
    %p238 = scmp.eq.s32.totalorder %s21, 0
    %p239 = por %p237, %p238
    %s241 = sadd.s32 %s240, 1
    %p244 = scmp.eq.s32.totalorder %s15, 1
    %p245 = scmp.ne.s32.totalorder %s240, %s242
    %p246 = scmp.eq.s32.totalorder %s15, 0
    %p247 = por %p245, %p246
    %p248 = scmp.ne.s32.totalorder %s240, %s242
    %p249 = scmp.eq.s32.totalorder %s20, 1
    %p250 = por %p248, %p249
    %p251 = scmp.ne.s32.totalorder %s242, %s243
    %p252 = scmp.eq.s32.totalorder %s20, 0
    %p253 = por %p251, %p252
    %p254 = scmp.ne.s32.totalorder %s242, %s243
    %p255 = scmp.eq.s32.totalorder %s21, 1
    %p256 = por %p254, %p255
    %p258 = scmp.ne.s32.totalorder %s243, %s257
    %p259 = scmp.eq.s32.totalorder %s21, 0
    %p260 = por %p258, %p259
    %s261 = ssub.s32 %s22, %s34
    %s262 = ssub.s32 %s23, %s30
    %s263 = sor.u32 %s261, %s262
    %p264 = scmp.eq.s32.totalorder %s263, 0
    %s266 = sadd.s32 %s265, 1
    %s267 = scalar_select %p264, %s265, %s266
    %p270 = pneg %p264
    %p271 = scmp.eq.s32.totalorder %s15, 1
    %p272 = por %p270, %p271
    %p273 = scmp.ne.s32.totalorder %s265, %s268
    %p274 = scmp.eq.s32.totalorder %s15, 0
    %p275 = por %p273, %p274
    %p276 = scmp.ne.s32.totalorder %s265, %s268
    %p277 = scmp.eq.s32.totalorder %s20, 1
    %p278 = por %p276, %p277
    %p279 = scmp.ne.s32.totalorder %s268, %s269
    %p280 = scmp.eq.s32.totalorder %s20, 0
    %p281 = por %p279, %p280
    %p282 = scmp.ne.s32.totalorder %s268, %s269
    %p283 = scmp.eq.s32.totalorder %s21, 1
    %p284 = por %p282, %p283
    %p286 = scmp.ne.s32.totalorder %s269, %s285
    %p287 = scmp.eq.s32.totalorder %s21, 0
    %p288 = por %p286, %p287
    %p289 = scmp.le.s32.totalorder 1, %s15
    %p290 = scmp.lt.s32.totalorder %s15, 3
    %p291 = pnand %p289, %p290
    %p292 = pneg %p291
    // Predicated region
    $region9: #{aerca_forward.2} parent=5 // pred_check
      _
    $region10: #{aerca_forward.2} parent=5 // pred_check_branch
      %294 = sbr.rel (%p291) target = $region12
    $region11: #{aerca_forward.2} parent=5 // pred_region
      %s295 = ssub.s32 %s15, 1
      // Predicated region
      $region13: #{aerca_forward.2} parent=11 // pred_check
        %p296 = pneg %p81
      $region14: #{aerca_forward.2} parent=11 // pred_check_branch
        %298 = sbr.rel (%p296) target = $region16
      $region15: #{aerca_forward.2} parent=11 // pred_region
        %p299 = scmp.lt.s32.totalorder %s24, 0
        %s300 = scalar_select %p299, %s24, 0
        %s301 = smul.addr %s300, 2
        %s302 = smul.addr %s301, 8
        %s303 = scalar_lea.vmem %s1, %s302
      $region16: #{aerca_forward.2} parent=11 // pred_fallthru
        _
      // Predicated region
      $region17: #{aerca_forward.2} parent=11 // pred_check
        %p304 = pneg %p107
      $region18: #{aerca_forward.2} parent=11 // pred_check_branch
        %306 = sbr.rel (%p304) target = $region20
      $region19: #{aerca_forward.2} parent=11 // pred_region
        %p307 = scmp.lt.s32.totalorder %s24, 0
        %s308 = scalar_select %p307, %s24, 0
        %s309 = scalar_lea.vmem %s2, %s308
      $region20: #{aerca_forward.2} parent=11 // pred_fallthru
        _
      // Predicated region
      $region21: #{aerca_forward.2} parent=11 // pred_check
        %p310 = pneg %p133
      $region22: #{aerca_forward.2} parent=11 // pred_check_branch
        %312 = sbr.rel (%p310) target = $region24
      $region23: #{aerca_forward.2} parent=11 // pred_region
        %p313 = scmp.lt.s32.totalorder %s24, 0
        %s314 = scalar_select %p313, %s24, 0
        %s315 = smul.addr %s314, 12
        %s316 = smul.addr %s315, 8
        %s317 = scalar_lea.vmem %s3, %s316
      $region24: #{aerca_forward.2} parent=11 // pred_fallthru
        _
      // Predicated region
      $region25: #{aerca_forward.2} parent=11 // pred_check
        %p318 = pneg %p159
      $region26: #{aerca_forward.2} parent=11 // pred_check_branch
        %320 = sbr.rel (%p318) target = $region28
      $region27: #{aerca_forward.2} parent=11 // pred_region
        %p321 = scmp.lt.s32.totalorder %s24, 0
        %s322 = scalar_select %p321, %s24, 0
        %s323 = scalar_lea.vmem %s4, %s322
      $region28: #{aerca_forward.2} parent=11 // pred_fallthru
        _
      // Predicated region
      $region29: #{aerca_forward.2} parent=11 // pred_check
        %p324 = pneg %p185
      $region30: #{aerca_forward.2} parent=11 // pred_check_branch
        %326 = sbr.rel (%p324) target = $region32
      $region31: #{aerca_forward.2} parent=11 // pred_region
        %p327 = scmp.lt.s32.totalorder %s24, 0
        %s328 = scalar_select %p327, %s24, 0
        %s329 = smul.addr %s328, 12
        %s330 = smul.addr %s329, 8
        %s331 = scalar_lea.vmem %s5, %s330
      $region32: #{aerca_forward.2} parent=11 // pred_fallthru
        _
      // Predicated region
      $region33: #{aerca_forward.2} parent=11 // pred_check
        %p332 = pneg %p211
      $region34: #{aerca_forward.2} parent=11 // pred_check_branch
        %334 = sbr.rel (%p332) target = $region36
      $region35: #{aerca_forward.2} parent=11 // pred_region
        %p335 = scmp.lt.s32.totalorder %s24, 0
        %s336 = scalar_select %p335, %s24, 0
        %s337 = scalar_lea.vmem %s6, %s336
      $region36: #{aerca_forward.2} parent=11 // pred_fallthru
        _
      // Predicated region
      $region37: #{aerca_forward.2} parent=11 // pred_check
        %p338 = pneg %p232
      $region38: #{aerca_forward.2} parent=11 // pred_check_branch
        %340 = sbr.rel (%p338) target = $region40
      $region39: #{aerca_forward.2} parent=11 // pred_region
        _
      $region40: #{aerca_forward.2} parent=11 // pred_fallthru
        _
      // Predicated region
      $region41: #{aerca_forward.2} parent=11 // pred_check
        %p341 = pneg %p253
      $region42: #{aerca_forward.2} parent=11 // pred_check_branch
        %343 = sbr.rel (%p341) target = $region44
      $region43: #{aerca_forward.2} parent=11 // pred_region
        _
      $region44: #{aerca_forward.2} parent=11 // pred_fallthru
        _
    $region12: #{aerca_forward.2} parent=5 // pred_fallthru
      _
    %p344 = scmp.lt.s32.totalorder %s15, 2
    // Predicated region
    $region45: #{aerca_forward.2} parent=5 // pred_check
      %p345 = pneg %p344
    $region46: #{aerca_forward.2} parent=5 // pred_check_branch
      %347 = sbr.rel (%p345) target = $region48
    $region47: #{aerca_forward.2} parent=5 // pred_region
      // Predicated region
      $region49: #{aerca_forward.2} parent=47 // pred_check
        %p348 = pneg %p49
      $region50: #{aerca_forward.2} parent=47 // pred_check_branch
        %350 = sbr.rel (%p348) target = $region52
      $region51: #{aerca_forward.2} parent=47 // pred_region
        %s351 = smul.u32 4, %s23
        %p352 = scmp.lt.s32.totalorder %s22, 0
        %s353 = scalar_select %p352, %s22, 0
        %p354 = scmp.lt.s32.totalorder %s351, 7
        %s355 = scalar_select %p354, %s351, 7
        %s356 = smul.addr %s353, 8
        %s357 = sadd.s32 %s355, %s356
        %s358 = smul.addr %s357, 8
        %s359 = scalar_lea.vmem %s0, %s358
        %s360 = smul.u32 4, %s23
      $region52: #{aerca_forward.2} parent=47 // pred_fallthru
        _
    $region48: #{aerca_forward.2} parent=5 // pred_fallthru
      _
    %p361 = scmp.le.s32.totalorder 1, %s15
    %p362 = scmp.lt.s32.totalorder %s15, 3
    %p363 = pnand %p361, %p362
    %p364 = pneg %p363
    // Predicated region
    $region53: #{aerca_forward.2} parent=5 // pred_check
      _
    $region54: #{aerca_forward.2} parent=5 // pred_check_branch
      %366 = sbr.rel (%p363) target = $region56
    $region55: #{aerca_forward.2} parent=5 // pred_region
      %s367 = ssub.s32 %s15, 1
      %s368 = smul.u32 4, %s25
      %p369 = scmp.lt.s32.totalorder %s24, 0
      %s370 = scalar_select %p369, %s24, 0
      %p371 = scmp.lt.s32.totalorder %s368, 7
      %s372 = scalar_select %p371, %s368, 7
      %s373 = smul.addr %s370, 8
      %s374 = sadd.s32 %s372, %s373
      %s375 = smul.addr %s374, 8
      %s376 = scalar_lea.vmem %s0, %s375
      %p377 = pneg %p55
      %p378 = pneg %p52
      %p379 = scmp.lt.s32.totalorder %s24, 0
      %s380 = scalar_select %p379, %s24, 0
      %s381 = smul.addr %s380, 2
      %s382 = smul.addr %s381, 8
      %s383 = scalar_lea.vmem %s1, %s382
      %p384 = pneg %p81
      %p385 = pneg %p78
      %p386 = scmp.lt.s32.totalorder %s24, 0
      %s387 = scalar_select %p386, %s24, 0
      %s388 = scalar_lea.vmem %s2, %s387
      %p389 = pneg %p107
      %p390 = pneg %p104
      %p391 = scmp.lt.s32.totalorder %s24, 0
      %s392 = scalar_select %p391, %s24, 0
      %s393 = smul.addr %s392, 12
      %s394 = smul.addr %s393, 8
      %s395 = scalar_lea.vmem %s3, %s394
      %p396 = pneg %p133
      %p397 = pneg %p130
      %p398 = scmp.lt.s32.totalorder %s24, 0
      %s399 = scalar_select %p398, %s24, 0
      %s400 = scalar_lea.vmem %s4, %s399
      %p401 = pneg %p159
      %p402 = pneg %p156
      %p403 = scmp.lt.s32.totalorder %s24, 0
      %s404 = scalar_select %p403, %s24, 0
      %s405 = smul.addr %s404, 12
      %s406 = smul.addr %s405, 8
      %s407 = scalar_lea.vmem %s5, %s406
      %p408 = pneg %p185
      %p409 = pneg %p182
      %p410 = scmp.lt.s32.totalorder %s24, 0
      %s411 = scalar_select %p410, %s24, 0
      %s412 = scalar_lea.vmem %s6, %s411
      %p413 = pneg %p211
      %p414 = pneg %p208
      %p415 = pneg %p232
      %p416 = pneg %p229
      %p417 = pneg %p253
      %p418 = pneg %p250
      %p419 = pneg %p281
      %p420 = pneg %p278
      %s421 = smul.u32 4, %s25
      %p422 = scmp.lt.s32.totalorder %s24, 0
      %s423 = scalar_select %p422, %s24, 0
      %p424 = scmp.lt.s32.totalorder %s421, 7
      %s425 = scalar_select %p424, %s421, 7
      %s426 = smul.addr %s423, 8
      %s427 = sadd.s32 %s425, %s426
      %s428 = smul.addr %s427, 8
      %s429 = scalar_lea.vmem %s9, %s428
      %s430 = smul.u32 4, %s25
      %p431 = scmp.lt.s32.totalorder %s24, 0
      %s432 = scalar_select %p431, %s24, 0
      %p433 = scmp.lt.s32.totalorder %s430, 7
      %s434 = scalar_select %p433, %s430, 7
      %s435 = smul.addr %s432, 8
      %s436 = sadd.s32 %s434, %s435
      %s437 = smul.addr %s436, 8
      %s438 = scalar_lea.vmem %s0, %s437
      %s439 = smul.u32 4, %s25
      %p440 = scmp.lt.s32.totalorder %s24, 0
      %s441 = scalar_select %p440, %s24, 0
      %s442 = smul.addr %s441, 2
      %s443 = smul.addr %s442, 8
      %s444 = scalar_lea.vmem %s1, %s443
      %p445 = scmp.lt.s32.totalorder %s24, 0
      %s446 = scalar_select %p445, %s24, 0
      %s447 = scalar_lea.vmem %s2, %s446
      %p448 = scmp.lt.s32.totalorder %s24, 0
      %s449 = scalar_select %p448, %s24, 0
      %s450 = smul.addr %s449, 12
      %s451 = smul.addr %s450, 8
      %s452 = scalar_lea.vmem %s3, %s451
      %p453 = scmp.lt.s32.totalorder %s24, 0
      %s454 = scalar_select %p453, %s24, 0
      %s455 = scalar_lea.vmem %s4, %s454
      %p456 = scmp.lt.s32.totalorder %s24, 0
      %s457 = scalar_select %p456, %s24, 0
      %s458 = smul.addr %s457, 12
      %s459 = smul.addr %s458, 8
      %s460 = scalar_lea.vmem %s5, %s459
      %p461 = scmp.lt.s32.totalorder %s24, 0
      %s462 = scalar_select %p461, %s24, 0
      %s463 = scalar_lea.vmem %s6, %s462
      %s464 = smul.u32 4, %s25
      %p465 = scmp.lt.s32.totalorder %s24, 0
      %s466 = scalar_select %p465, %s24, 0
      %p467 = scmp.lt.s32.totalorder %s464, 7
      %s468 = scalar_select %p467, %s464, 7
      %s469 = smul.addr %s466, 8
      %s470 = sadd.s32 %s468, %s469
      %s471 = smul.addr %s470, 8
      %s472 = scalar_lea.vmem %s9, %s471
      %s473 = smul.u32 4, %s25
      %v474 = vld [vmem:[%s438] sm:$0xff]
      %v475 = vld [vmem:[%s438 + $0x8] sm:$0xff]
      %v476 = vld [vmem:[%s438 + $0x10] sm:$0xff]
      %v477 = vld [vmem:[%s438 + $0x18] sm:$0xff]
      %v478 = vld [vmem:[%s444] sm:$0xff]
      %v479 = vld [vmem:[%s444 + $0x8] sm:$0xf]
      %v480 = vld [vmem:[%s447] sm:$0x1]
      %v482 = vlaneseq
      %v483 = vshrl.u32 %v482, 7
      %v484 = vsub.s32 0, %v483
      %v485 = vrot.slane %v480, %v484
      %vm487 = vcmask 97280
      %v489 = vsel %vm487, %v474, 0
      %v492 = vsel %vm487, %v475, 0
      %v495 = vsel %vm487, %v476, 0
      %v498 = vsel %vm487, %v477, 0
      %vm500 = vcmask 1043456
      %v502 = vsel %vm500, %v479, 0
      %504 = vmatprep.subr.mxu0 0.0
      %505 = vmatpush1.msra.mxu0 %v478
      %506 = vmatprep.subr.mxu0 0.0
      %507 = vmatpush1.msra.mxu0 %v502
      %508 = vmatprep.subr.mxu0 0.0
      %509 = vmatpush1.msra.mxu0 0.0
      %510 = vmatprep.subr.mxu0 0.0
      %511 = vmatpush1.msra.mxu0 0.0
      %512 = vmatprep.subr.mxu0 0.0
      %513 = vmatpush1.msra.mxu0 0.0
      %514 = vmatprep.subr.mxu0 0.0
      %515 = vmatpush1.msra.mxu0 0.0
      %516 = vmatprep.subr.mxu0 0.0
      %517 = vmatpush1.msra.mxu0 0.0
      %518 = vmatprep.subr.mxu0 0.0
      %519 = vmatpush1.msra.mxu0 0.0
      %520 = vmatprep.subr.mxu0 0.0
      %521 = vmatpush1.msra.mxu0 0.0
      %522 = vmatprep.subr.mxu0 0.0
      %523 = vmatpush1.msra.mxu0 0.0
      %524 = vmatprep.subr.mxu0 0.0
      %525 = vmatpush1.msra.mxu0 0.0
      %526 = vmatprep.subr.mxu0 0.0
      %527 = vmatpush1.msra.mxu0 0.0
      %528 = vmatprep.subr.mxu0 0.0
      %529 = vmatpush1.msra.mxu0 0.0
      %530 = vmatprep.subr.mxu0 0.0
      %531 = vmatpush1.msra.mxu0 0.0
      %532 = vmatprep.subr.mxu0 0.0
      %533 = vmatpush1.msra.mxu0 0.0
      %534 = vmatprep.subr.mxu0 0.0
      %535 = vmatpush1.msra.mxu0 0.0
      %536 = vmatprep.subr.mxu0 0.0
      %537 = vmatpush1.msra.mxu0 0.0
      %538 = vmatprep.subr.mxu0 0.0
      %539 = vmatpush1.msra.mxu0 0.0
      %540 = vmatprep.subr.mxu0 0.0
      %541 = vmatpush1.msra.mxu0 0.0
      %542 = vmatprep.subr.mxu0 0.0
      %543 = vmatpush1.msra.mxu0 0.0
      %544 = vmatprep.subr.mxu0 0.0
      %545 = vmatpush1.msra.mxu0 0.0
      %546 = vmatprep.subr.mxu0 0.0
      %547 = vmatpush1.msra.mxu0 0.0
      %548 = vmatprep.subr.mxu0 0.0
      %549 = vmatpush1.msra.mxu0 0.0
      %550 = vmatprep.subr.mxu0 0.0
      %551 = vmatpush1.msra.mxu0 0.0
      %552 = vmatprep.subr.mxu0 0.0
      %553 = vmatpush1.msra.mxu0 0.0
      %554 = vmatprep.subr.mxu0 0.0
      %555 = vmatpush1.msra.mxu0 0.0
      %556 = vmatprep.subr.mxu0 0.0
      %557 = vmatpush1.msra.mxu0 0.0
      %558 = vmatprep.subr.mxu0 0.0
      %559 = vmatpush1.msra.mxu0 0.0
      %560 = vmatprep.subr.mxu0 0.0
      %561 = vmatpush1.msra.mxu0 0.0
      %562 = vmatprep.subr.mxu0 0.0
      %563 = vmatpush1.msra.mxu0 0.0
      %564 = vmatprep.subr.mxu0 0.0
      %565 = vmatpush1.msra.mxu0 0.0
      %566 = vmatprep.subr.mxu0 0.0
      %567 = vmatpush1.msra.mxu0 0.0
      %568 = vmatprep.mubr.f32.mxu0 0.0
      %569 = vmatmul.mubr.f32.gmra.mrb[0].mxu0 %v489
      %v570 = vpop.f32.mrb[0].mxu0
      %v571 = vadd.f32 %v485, %v570
      %v572 = vpop.f32.mrb[0].mxu0
      %573 = vmatprep.mubr.f32.mxu0 0.0
      %574 = vmatmul.mubr.f32.gmra.mrb[0].mxu0 %v492
      %v575 = vpop.f32.mrb[0].mxu0
      %v576 = vadd.f32 %v485, %v575
      %v577 = vpop.f32.mrb[0].mxu0
      %578 = vmatprep.mubr.f32.mxu0 0.0
      %579 = vmatmul.mubr.f32.gmra.mrb[0].mxu0 %v495
      %v580 = vpop.f32.mrb[0].mxu0
      %v581 = vadd.f32 %v485, %v580
      %v582 = vpop.f32.mrb[0].mxu0
      %583 = vmatprep.mubr.f32.mxu0 0.0
      %584 = vmatmul.mubr.f32.gmra.mrb[0].mxu0 %v498
      %v585 = vpop.f32.mrb[0].mxu0
      %v586 = vadd.f32 %v485, %v585
      %v587 = vpop.f32.mrb[0].mxu0
      %588 = vdwg.mxu0
      %v589 = vmax.f32 %v571, 0.0
      %v590 = vmax.f32 %v576, 0.0
      %v591 = vmax.f32 %v581, 0.0
      %v592 = vmax.f32 %v586, 0.0
      %v593 = vld [vmem:[%s452] sm:$0xff]
      %v594 = vld [vmem:[%s452 + $0x8] sm:$0xff]
      %v595 = vld [vmem:[%s452 + $0x10] sm:$0xff]
      %v596 = vld [vmem:[%s452 + $0x18] sm:$0xff]
      %v597 = vld [vmem:[%s452 + $0x20] sm:$0xff]
      %v598 = vld [vmem:[%s452 + $0x28] sm:$0xff]
      %v599 = vld [vmem:[%s452 + $0x30] sm:$0xff]
      %v600 = vld [vmem:[%s452 + $0x38] sm:$0xff]
      %v601 = vld [vmem:[%s452 + $0x40] sm:$0xff]
      %v602 = vld [vmem:[%s452 + $0x48] sm:$0xff]
      %v603 = vld [vmem:[%s452 + $0x50] sm:$0xff]
      %v604 = vld [vmem:[%s452 + $0x58] sm:$0xff]
      %v605 = vld [vmem:[%s455] sm:$0x1]
      %v607 = vlaneseq
      %v608 = vshrl.u32 %v607, 7
      %v609 = vsub.s32 0, %v608
      %v610 = vrot.slane %v605, %v609
      %vm612 = vcmask 785408
      %v614 = vsel %vm612, %v589, 0
      %v617 = vsel %vm612, %v590, 0
      %v620 = vsel %vm612, %v591, 0
      %v623 = vsel %vm612, %v592, 0
      %625 = vmatprep.subr.mxu0 0.0
      %626 = vmatpush1.msra.mxu0 %v593
      %627 = vmatprep.subr.mxu0 0.0
      %628 = vmatpush1.msra.mxu0 %v594
      %629 = vmatprep.subr.mxu0 0.0
      %630 = vmatpush1.msra.mxu0 %v595
      %631 = vmatprep.subr.mxu0 0.0
      %632 = vmatpush1.msra.mxu0 %v596
      %633 = vmatprep.subr.mxu0 0.0
      %634 = vmatpush1.msra.mxu0 %v597
      %635 = vmatprep.subr.mxu0 0.0
      %636 = vmatpush1.msra.mxu0 %v598
      %637 = vmatprep.subr.mxu0 0.0
      %638 = vmatpush1.msra.mxu0 %v599
      %639 = vmatprep.subr.mxu0 0.0
      %640 = vmatpush1.msra.mxu0 %v600
      %641 = vmatprep.subr.mxu0 0.0
      %642 = vmatpush1.msra.mxu0 %v601
      %643 = vmatprep.subr.mxu0 0.0
      %644 = vmatpush1.msra.mxu0 %v602
      %645 = vmatprep.subr.mxu0 0.0
      %646 = vmatpush1.msra.mxu0 %v603
      %647 = vmatprep.subr.mxu0 0.0
      %648 = vmatpush1.msra.mxu0 %v604
      %649 = vmatprep.subr.mxu0 0.0
      %650 = vmatpush1.msra.mxu0 0.0
      %651 = vmatprep.subr.mxu0 0.0
      %652 = vmatpush1.msra.mxu0 0.0
      %653 = vmatprep.subr.mxu0 0.0
      %654 = vmatpush1.msra.mxu0 0.0
      %655 = vmatprep.subr.mxu0 0.0
      %656 = vmatpush1.msra.mxu0 0.0
      %657 = vmatprep.subr.mxu0 0.0
      %658 = vmatpush1.msra.mxu0 0.0
      %659 = vmatprep.subr.mxu0 0.0
      %660 = vmatpush1.msra.mxu0 0.0
      %661 = vmatprep.subr.mxu0 0.0
      %662 = vmatpush1.msra.mxu0 0.0
      %663 = vmatprep.subr.mxu0 0.0
      %664 = vmatpush1.msra.mxu0 0.0
      %665 = vmatprep.subr.mxu0 0.0
      %666 = vmatpush1.msra.mxu0 0.0
      %667 = vmatprep.subr.mxu0 0.0
      %668 = vmatpush1.msra.mxu0 0.0
      %669 = vmatprep.subr.mxu0 0.0
      %670 = vmatpush1.msra.mxu0 0.0
      %671 = vmatprep.subr.mxu0 0.0
      %672 = vmatpush1.msra.mxu0 0.0
      %673 = vmatprep.subr.mxu0 0.0
      %674 = vmatpush1.msra.mxu0 0.0
      %675 = vmatprep.subr.mxu0 0.0
      %676 = vmatpush1.msra.mxu0 0.0
      %677 = vmatprep.subr.mxu0 0.0
      %678 = vmatpush1.msra.mxu0 0.0
      %679 = vmatprep.subr.mxu0 0.0
      %680 = vmatpush1.msra.mxu0 0.0
      %681 = vmatprep.subr.mxu0 0.0
      %682 = vmatpush1.msra.mxu0 0.0
      %683 = vmatprep.subr.mxu0 0.0
      %684 = vmatpush1.msra.mxu0 0.0
      %685 = vmatprep.subr.mxu0 0.0
      %686 = vmatpush1.msra.mxu0 0.0
      %687 = vmatprep.subr.mxu0 0.0
      %688 = vmatpush1.msra.mxu0 0.0
      %689 = vmatprep.mubr.f32.mxu0 0.0
      %690 = vmatmul.mubr.f32.gmra.mrb[0].mxu0 %v614
      %v691 = vpop.f32.mrb[0].mxu0
      %v692 = vadd.f32 %v610, %v691
      %v693 = vpop.f32.mrb[0].mxu0
      %694 = vmatprep.mubr.f32.mxu0 0.0
      %695 = vmatmul.mubr.f32.gmra.mrb[0].mxu0 %v617
      %v696 = vpop.f32.mrb[0].mxu0
      %v697 = vadd.f32 %v610, %v696
      %v698 = vpop.f32.mrb[0].mxu0
      %699 = vmatprep.mubr.f32.mxu0 0.0
      %700 = vmatmul.mubr.f32.gmra.mrb[0].mxu0 %v620
      %v701 = vpop.f32.mrb[0].mxu0
      %v702 = vadd.f32 %v610, %v701
      %v703 = vpop.f32.mrb[0].mxu0
      %704 = vmatprep.mubr.f32.mxu0 0.0
      %705 = vmatmul.mubr.f32.gmra.mrb[0].mxu0 %v623
      %v706 = vpop.f32.mrb[0].mxu0
      %v707 = vadd.f32 %v610, %v706
      %v708 = vpop.f32.mrb[0].mxu0
      %709 = vdwg.mxu0
      %v710 = vmax.f32 %v692, 0.0
      %v711 = vmax.f32 %v697, 0.0
      %v712 = vmax.f32 %v702, 0.0
      %v713 = vmax.f32 %v707, 0.0
      %v714 = vld [vmem:[%s460] sm:$0xff]
      %v715 = vld [vmem:[%s460 + $0x8] sm:$0xff]
      %v716 = vld [vmem:[%s460 + $0x10] sm:$0xff]
      %v717 = vld [vmem:[%s460 + $0x18] sm:$0xff]
      %v718 = vld [vmem:[%s460 + $0x20] sm:$0xff]
      %v719 = vld [vmem:[%s460 + $0x28] sm:$0xff]
      %v720 = vld [vmem:[%s460 + $0x30] sm:$0xff]
      %v721 = vld [vmem:[%s460 + $0x38] sm:$0xff]
      %v722 = vld [vmem:[%s460 + $0x40] sm:$0xff]
      %v723 = vld [vmem:[%s460 + $0x48] sm:$0xff]
      %v724 = vld [vmem:[%s460 + $0x50] sm:$0xff]
      %v725 = vld [vmem:[%s460 + $0x58] sm:$0xff]
      %v726 = vld [vmem:[%s463] sm:$0x1]
      %v728 = vlaneseq
      %v729 = vshrl.u32 %v728, 7
      %v730 = vsub.s32 0, %v729
      %v731 = vrot.slane %v726, %v730
      %v734 = vsel %vm612, %v710, 0
      %v737 = vsel %vm612, %v711, 0
      %v740 = vsel %vm612, %v712, 0
      %v743 = vsel %vm612, %v713, 0
      %745 = vmatprep.subr.mxu0 0.0
      %746 = vmatpush1.msra.mxu0 %v714
      %747 = vmatprep.subr.mxu0 0.0
      %748 = vmatpush1.msra.mxu0 %v715
      %749 = vmatprep.subr.mxu0 0.0
      %750 = vmatpush1.msra.mxu0 %v716
      %751 = vmatprep.subr.mxu0 0.0
      %752 = vmatpush1.msra.mxu0 %v717
      %753 = vmatprep.subr.mxu0 0.0
      %754 = vmatpush1.msra.mxu0 %v718
      %755 = vmatprep.subr.mxu0 0.0
      %756 = vmatpush1.msra.mxu0 %v719
      %757 = vmatprep.subr.mxu0 0.0
      %758 = vmatpush1.msra.mxu0 %v720
      %759 = vmatprep.subr.mxu0 0.0
      %760 = vmatpush1.msra.mxu0 %v721
      %761 = vmatprep.subr.mxu0 0.0
      %762 = vmatpush1.msra.mxu0 %v722
      %763 = vmatprep.subr.mxu0 0.0
      %764 = vmatpush1.msra.mxu0 %v723
      %765 = vmatprep.subr.mxu0 0.0
      %766 = vmatpush1.msra.mxu0 %v724
      %767 = vmatprep.subr.mxu0 0.0
      %768 = vmatpush1.msra.mxu0 %v725
      %769 = vmatprep.subr.mxu0 0.0
      %770 = vmatpush1.msra.mxu0 0.0
      %771 = vmatprep.subr.mxu0 0.0
      %772 = vmatpush1.msra.mxu0 0.0
      %773 = vmatprep.subr.mxu0 0.0
      %774 = vmatpush1.msra.mxu0 0.0
      %775 = vmatprep.subr.mxu0 0.0
      %776 = vmatpush1.msra.mxu0 0.0
      %777 = vmatprep.subr.mxu0 0.0
      %778 = vmatpush1.msra.mxu0 0.0
      %779 = vmatprep.subr.mxu0 0.0
      %780 = vmatpush1.msra.mxu0 0.0
      %781 = vmatprep.subr.mxu0 0.0
      %782 = vmatpush1.msra.mxu0 0.0
      %783 = vmatprep.subr.mxu0 0.0
      %784 = vmatpush1.msra.mxu0 0.0
      %785 = vmatprep.subr.mxu0 0.0
      %786 = vmatpush1.msra.mxu0 0.0
      %787 = vmatprep.subr.mxu0 0.0
      %788 = vmatpush1.msra.mxu0 0.0
      %789 = vmatprep.subr.mxu0 0.0
      %790 = vmatpush1.msra.mxu0 0.0
      %791 = vmatprep.subr.mxu0 0.0
      %792 = vmatpush1.msra.mxu0 0.0
      %793 = vmatprep.subr.mxu0 0.0
      %794 = vmatpush1.msra.mxu0 0.0
      %795 = vmatprep.subr.mxu0 0.0
      %796 = vmatpush1.msra.mxu0 0.0
      %797 = vmatprep.subr.mxu0 0.0
      %798 = vmatpush1.msra.mxu0 0.0
      %799 = vmatprep.subr.mxu0 0.0
      %800 = vmatpush1.msra.mxu0 0.0
      %801 = vmatprep.subr.mxu0 0.0
      %802 = vmatpush1.msra.mxu0 0.0
      %803 = vmatprep.subr.mxu0 0.0
      %804 = vmatpush1.msra.mxu0 0.0
      %805 = vmatprep.subr.mxu0 0.0
      %806 = vmatpush1.msra.mxu0 0.0
      %807 = vmatprep.subr.mxu0 0.0
      %808 = vmatpush1.msra.mxu0 0.0
      %809 = vmatprep.mubr.f32.mxu0 0.0
      %810 = vmatmul.mubr.f32.gmra.mrb[0].mxu0 %v734
      %v811 = vpop.f32.mrb[0].mxu0
      %v812 = vadd.f32 %v731, %v811
      %v813 = vpop.f32.mrb[0].mxu0
      %814 = vmatprep.mubr.f32.mxu0 0.0
      %815 = vmatmul.mubr.f32.gmra.mrb[0].mxu0 %v737
      %v816 = vpop.f32.mrb[0].mxu0
      %v817 = vadd.f32 %v731, %v816
      %v818 = vpop.f32.mrb[0].mxu0
      %819 = vmatprep.mubr.f32.mxu0 0.0
      %820 = vmatmul.mubr.f32.gmra.mrb[0].mxu0 %v740
      %v821 = vpop.f32.mrb[0].mxu0
      %v822 = vadd.f32 %v731, %v821
      %v823 = vpop.f32.mrb[0].mxu0
      %824 = vmatprep.mubr.f32.mxu0 0.0
      %825 = vmatmul.mubr.f32.gmra.mrb[0].mxu0 %v743
      %v826 = vpop.f32.mrb[0].mxu0
      %v827 = vadd.f32 %v731, %v826
      %v828 = vpop.f32.mrb[0].mxu0
      %829 = vdwg.mxu0
      %v830 = vld [vmem:[%s7] sm:$0xff]
      %v831 = vld [vmem:[%s7 + $0x8] sm:$0xf]
      %v833 = vsel %vm500, %v831, 0
      %835 = vmatprep.subr.mxu0 0.0
      %836 = vmatpush1.msra.mxu0 %v830
      %837 = vmatprep.subr.mxu0 0.0
      %838 = vmatpush1.msra.mxu0 %v833
      %839 = vmatprep.subr.mxu0 0.0
      %840 = vmatpush1.msra.mxu0 0.0
      %841 = vmatprep.subr.mxu0 0.0
      %842 = vmatpush1.msra.mxu0 0.0
      %843 = vmatprep.subr.mxu0 0.0
      %844 = vmatpush1.msra.mxu0 0.0
      %845 = vmatprep.subr.mxu0 0.0
      %846 = vmatpush1.msra.mxu0 0.0
      %847 = vmatprep.subr.mxu0 0.0
      %848 = vmatpush1.msra.mxu0 0.0
      %849 = vmatprep.subr.mxu0 0.0
      %850 = vmatpush1.msra.mxu0 0.0
      %851 = vmatprep.subr.mxu0 0.0
      %852 = vmatpush1.msra.mxu0 0.0
      %853 = vmatprep.subr.mxu0 0.0
      %854 = vmatpush1.msra.mxu0 0.0
      %855 = vmatprep.subr.mxu0 0.0
      %856 = vmatpush1.msra.mxu0 0.0
      %857 = vmatprep.subr.mxu0 0.0
      %858 = vmatpush1.msra.mxu0 0.0
      %859 = vmatprep.subr.mxu0 0.0
      %860 = vmatpush1.msra.mxu0 0.0
      %861 = vmatprep.subr.mxu0 0.0
      %862 = vmatpush1.msra.mxu0 0.0
      %863 = vmatprep.subr.mxu0 0.0
      %864 = vmatpush1.msra.mxu0 0.0
      %865 = vmatprep.subr.mxu0 0.0
      %866 = vmatpush1.msra.mxu0 0.0
      %867 = vmatprep.subr.mxu0 0.0
      %868 = vmatpush1.msra.mxu0 0.0
      %869 = vmatprep.subr.mxu0 0.0
      %870 = vmatpush1.msra.mxu0 0.0
      %871 = vmatprep.subr.mxu0 0.0
      %872 = vmatpush1.msra.mxu0 0.0
      %873 = vmatprep.subr.mxu0 0.0
      %874 = vmatpush1.msra.mxu0 0.0
      %875 = vmatprep.subr.mxu0 0.0
      %876 = vmatpush1.msra.mxu0 0.0
      %877 = vmatprep.subr.mxu0 0.0
      %878 = vmatpush1.msra.mxu0 0.0
      %879 = vmatprep.subr.mxu0 0.0
      %880 = vmatpush1.msra.mxu0 0.0
      %881 = vmatprep.subr.mxu0 0.0
      %882 = vmatpush1.msra.mxu0 0.0
      %883 = vmatprep.subr.mxu0 0.0
      %884 = vmatpush1.msra.mxu0 0.0
      %885 = vmatprep.subr.mxu0 0.0
      %886 = vmatpush1.msra.mxu0 0.0
      %887 = vmatprep.subr.mxu0 0.0
      %888 = vmatpush1.msra.mxu0 0.0
      %889 = vmatprep.subr.mxu0 0.0
      %890 = vmatpush1.msra.mxu0 0.0
      %891 = vmatprep.subr.mxu0 0.0
      %892 = vmatpush1.msra.mxu0 0.0
      %893 = vmatprep.subr.mxu0 0.0
      %894 = vmatpush1.msra.mxu0 0.0
      %895 = vmatprep.subr.mxu0 0.0
      %896 = vmatpush1.msra.mxu0 0.0
      %897 = vmatprep.subr.mxu0 0.0
      %898 = vmatpush1.msra.mxu0 0.0
      %899 = vmatprep.mubr.f32.mxu0 0.0
      %900 = vmatmul.mubr.f32.gmra.mrb[0].mxu0 %v489
      %v901 = vpop.f32.mrb[0].mxu0
      %v902 = vadd.f32 0.0, %v901
      %v903 = vpop.f32.mrb[0].mxu0
      %904 = vmatprep.mubr.f32.mxu0 0.0
      %905 = vmatmul.mubr.f32.gmra.mrb[0].mxu0 %v492
      %v906 = vpop.f32.mrb[0].mxu0
      %v907 = vadd.f32 0.0, %v906
      %v908 = vpop.f32.mrb[0].mxu0
      %909 = vmatprep.mubr.f32.mxu0 0.0
      %910 = vmatmul.mubr.f32.gmra.mrb[0].mxu0 %v495
      %v911 = vpop.f32.mrb[0].mxu0
      %v912 = vadd.f32 0.0, %v911
      %v913 = vpop.f32.mrb[0].mxu0
      %914 = vmatprep.mubr.f32.mxu0 0.0
      %915 = vmatmul.mubr.f32.gmra.mrb[0].mxu0 %v498
      %v916 = vpop.f32.mrb[0].mxu0
      %v917 = vadd.f32 0.0, %v916
      %v918 = vpop.f32.mrb[0].mxu0
      %919 = vdwg.mxu0
      %v920 = vmul.f32 %v812, %v902
      %v921 = vmul.f32 %v817, %v907
      %v922 = vmul.f32 %v822, %v912
      %v923 = vmul.f32 %v827, %v917
      %v924 = vld [vmem:[%s8] sm:$0xff]
      %v925 = vld [vmem:[%s8 + $0x8] sm:$0xff]
      %v926 = vld [vmem:[%s8 + $0x10] sm:$0xff]
      %v927 = vld [vmem:[%s8 + $0x18] sm:$0xff]
      %v928 = vld [vmem:[%s8 + $0x20] sm:$0xff]
      %v929 = vld [vmem:[%s8 + $0x28] sm:$0xff]
      %vm930 = vcmask 392192
      %v932 = vsel %vm930, %v920, 0
      %v935 = vsel %vm930, %v921, 0
      %v938 = vsel %vm930, %v922, 0
      %v941 = vsel %vm930, %v923, 0
      %943 = vmatprep.subr.mxu0 0.0
      %944 = vmatpush1.msra.mxu0 %v924
      %945 = vmatprep.subr.mxu0 0.0
      %946 = vmatpush1.msra.mxu0 %v925
      %947 = vmatprep.subr.mxu0 0.0
      %948 = vmatpush1.msra.mxu0 %v926
      %949 = vmatprep.subr.mxu0 0.0
      %950 = vmatpush1.msra.mxu0 %v927
      %951 = vmatprep.subr.mxu0 0.0
      %952 = vmatpush1.msra.mxu0 %v928
      %953 = vmatprep.subr.mxu0 0.0
      %954 = vmatpush1.msra.mxu0 %v929
      %955 = vmatprep.subr.mxu0 0.0
      %956 = vmatpush1.msra.mxu0 0.0
      %957 = vmatprep.subr.mxu0 0.0
      %958 = vmatpush1.msra.mxu0 0.0
      %959 = vmatprep.subr.mxu0 0.0
      %960 = vmatpush1.msra.mxu0 0.0
      %961 = vmatprep.subr.mxu0 0.0
      %962 = vmatpush1.msra.mxu0 0.0
      %963 = vmatprep.subr.mxu0 0.0
      %964 = vmatpush1.msra.mxu0 0.0
      %965 = vmatprep.subr.mxu0 0.0
      %966 = vmatpush1.msra.mxu0 0.0
      %967 = vmatprep.subr.mxu0 0.0
      %968 = vmatpush1.msra.mxu0 0.0
      %969 = vmatprep.subr.mxu0 0.0
      %970 = vmatpush1.msra.mxu0 0.0
      %971 = vmatprep.subr.mxu0 0.0
      %972 = vmatpush1.msra.mxu0 0.0
      %973 = vmatprep.subr.mxu0 0.0
      %974 = vmatpush1.msra.mxu0 0.0
      %975 = vmatprep.subr.mxu0 0.0
      %976 = vmatpush1.msra.mxu0 0.0
      %977 = vmatprep.subr.mxu0 0.0
      %978 = vmatpush1.msra.mxu0 0.0
      %979 = vmatprep.subr.mxu0 0.0
      %980 = vmatpush1.msra.mxu0 0.0
      %981 = vmatprep.subr.mxu0 0.0
      %982 = vmatpush1.msra.mxu0 0.0
      %983 = vmatprep.subr.mxu0 0.0
      %984 = vmatpush1.msra.mxu0 0.0
      %985 = vmatprep.subr.mxu0 0.0
      %986 = vmatpush1.msra.mxu0 0.0
      %987 = vmatprep.subr.mxu0 0.0
      %988 = vmatpush1.msra.mxu0 0.0
      %989 = vmatprep.subr.mxu0 0.0
      %990 = vmatpush1.msra.mxu0 0.0
      %991 = vmatprep.subr.mxu0 0.0
      %992 = vmatpush1.msra.mxu0 0.0
      %993 = vmatprep.subr.mxu0 0.0
      %994 = vmatpush1.msra.mxu0 0.0
      %995 = vmatprep.subr.mxu0 0.0
      %996 = vmatpush1.msra.mxu0 0.0
      %997 = vmatprep.subr.mxu0 0.0
      %998 = vmatpush1.msra.mxu0 0.0
      %999 = vmatprep.subr.mxu0 0.0
      %1000 = vmatpush1.msra.mxu0 0.0
      %1001 = vmatprep.subr.mxu0 0.0
      %1002 = vmatpush1.msra.mxu0 0.0
      %1003 = vmatprep.subr.mxu0 0.0
      %1004 = vmatpush1.msra.mxu0 0.0
      %1005 = vmatprep.subr.mxu0 0.0
      %1006 = vmatpush1.msra.mxu0 0.0
      %1007 = vmatprep.mubr.f32.mxu0 0.0
      %1008 = vmatmul.mubr.f32.gmra.mrb[0].mxu0 %v932
      %v1009 = vpop.f32.mrb[0].mxu0
      %v1010 = vadd.f32 0.0, %v1009
      %v1011 = vpop.f32.mrb[0].mxu0
      %1012 = vmatprep.mubr.f32.mxu0 0.0
      %1013 = vmatmul.mubr.f32.gmra.mrb[0].mxu0 %v935
      %v1014 = vpop.f32.mrb[0].mxu0
      %v1015 = vadd.f32 0.0, %v1014
      %v1016 = vpop.f32.mrb[0].mxu0
      %1017 = vmatprep.mubr.f32.mxu0 0.0
      %1018 = vmatmul.mubr.f32.gmra.mrb[0].mxu0 %v938
      %v1019 = vpop.f32.mrb[0].mxu0
      %v1020 = vadd.f32 0.0, %v1019
      %v1021 = vpop.f32.mrb[0].mxu0
      %1022 = vmatprep.mubr.f32.mxu0 0.0
      %1023 = vmatmul.mubr.f32.gmra.mrb[0].mxu0 %v941
      %v1024 = vpop.f32.mrb[0].mxu0
      %v1025 = vadd.f32 0.0, %v1024
      %v1026 = vpop.f32.mrb[0].mxu0
      %1027 = vdwg.mxu0
      %1032 = vrot.lane.b32.xlu0 %v1010, 48
      %v1033 = vpop.permute.xlu0 %1032
      %1034 = vrot.lane.b32.xlu0 %v1015, 48
      %v1035 = vpop.permute.xlu0 %1034
      %1036 = vrot.lane.b32.xlu0 %v1020, 48
      %v1037 = vpop.permute.xlu0 %1036
      %1038 = vrot.lane.b32.xlu0 %v1025, 48
      %v1039 = vpop.permute.xlu0 %1038
      %v1044 = vsel %vm930, %v812, %v1033
      %v1045 = vsel %vm930, %v817, %v1035
      %v1046 = vsel %vm930, %v822, %v1037
      %v1047 = vsel %vm930, %v827, %v1039
      %vm1048 = vcmask 424960
      %1049 = vst.msk [vmem:[%s472] sm:$0xff] %vm1048, %v1044
      %1050 = vst.msk [vmem:[%s472 + $0x8] sm:$0xff] %vm1048, %v1045
      %1051 = vst.msk [vmem:[%s472 + $0x10] sm:$0xff] %vm1048, %v1046
      %1052 = vst.msk [vmem:[%s472 + $0x18] sm:$0xff] %vm1048, %v1047
      %s1053 = smul.u32 4, %s25
      %p1054 = scmp.lt.s32.totalorder %s24, 0
      %s1055 = scalar_select %p1054, %s24, 0
      %p1056 = scmp.lt.s32.totalorder %s1053, 7
      %s1057 = scalar_select %p1056, %s1053, 7
      %s1058 = smul.addr %s1055, 8
      %s1059 = sadd.s32 %s1057, %s1058
      %s1060 = smul.addr %s1059, 8
      %s1061 = scalar_lea.vmem %s9, %s1060
      // Predicated region
      $region57: #{aerca_forward.2} parent=55 // pred_check
        %p1062 = pneg %p278
      $region58: #{aerca_forward.2} parent=55 // pred_check_branch
        %1064 = sbr.rel (%p1062) target = $region60
      $region59: #{aerca_forward.2} parent=55 // pred_region
        %s1065 = smul.u32 4, %s25
      $region60: #{aerca_forward.2} parent=55 // pred_fallthru
        _
    $region56: #{aerca_forward.2} parent=5 // pred_fallthru
      _
    %p1066 = scmp.le.s32.totalorder 2, %s15
    // Predicated region
    $region61: #{aerca_forward.2} parent=5 // pred_check
      %p1067 = pneg %p1066
    $region62: #{aerca_forward.2} parent=5 // pred_check_branch
      %1069 = sbr.rel (%p1067) target = $region64
    $region63: #{aerca_forward.2} parent=5 // pred_region
      %s1070 = ssub.s32 %s15, 2
      // Predicated region
      $region65: #{aerca_forward.2} parent=63 // pred_check
        %p1071 = pneg %p284
      $region66: #{aerca_forward.2} parent=63 // pred_check_branch
        %1073 = sbr.rel (%p1071) target = $region68
      $region67: #{aerca_forward.2} parent=63 // pred_region
        %s1074 = smul.u32 4, %s27
        %p1075 = scmp.lt.s32.totalorder %s26, 0
        %s1076 = scalar_select %p1075, %s26, 0
        %p1077 = scmp.lt.s32.totalorder %s1074, 7
        %s1078 = scalar_select %p1077, %s1074, 7
        %s1079 = smul.addr %s1076, 8
        %s1080 = sadd.s32 %s1078, %s1079
        %s1081 = smul.addr %s1080, 8
        %s1082 = scalar_lea.vmem %s9, %s1081
      $region68: #{aerca_forward.2} parent=63 // pred_fallthru
        _
    $region64: #{aerca_forward.2} parent=5 // pred_fallthru
      _
  $region6: #{aerca_forward.2} parent=0 // loop_footer
    %s19 = sadd.s32 1, %s15
  $region7: #{aerca_forward.2} parent=0 // loop_footer_branch
    %14 = sbr.rel target = $region3
  $region8: #{aerca_forward.2} parent=0 // loop_exit
    _

// kernel: aerca_forward.3
$region0: #{aerca_forward.3}
  #allocation0 [shape = 'u32[]', space=smem, size = 0x4, offset = 0x4, fixed_abs, tag = 'smem constant byte address 0x4 - core index']
  #allocation1 [shape = 'u32[144,128]{1,0:T(1,128)}', space=vmem, size = 0x12000, scoped, tag = 'internal scratch']
  %s0 = inlined_call_operand.vmem [shape: f32[2,64,12], index: 0, kind: input, shape index: {}]
  %s1 = inlined_call_operand.vmem [shape: f32[2,12,96], index: 1, kind: input, shape index: {}]
  %s2 = inlined_call_operand.vmem [shape: f32[2,1,96], index: 2, kind: input, shape index: {}]
  %s3 = inlined_call_operand.vmem [shape: f32[2,1,96,96], index: 3, kind: input, shape index: {}]
  %s4 = inlined_call_operand.vmem [shape: f32[2,1,1,96], index: 4, kind: input, shape index: {}]
  %s5 = inlined_call_operand.vmem [shape: f32[2,96,48], index: 5, kind: input, shape index: {}]
  %s6 = inlined_call_operand.vmem [shape: f32[2,1,48], index: 6, kind: input, shape index: {}]
  %s7 = inlined_call_operand.vmem [shape: f32[12,48], index: 7, kind: input, shape index: {}]
  %s8 = inlined_call_operand.vmem [shape: f32[48,4], index: 8, kind: input, shape index: {}]
  %s9 = inlined_call_operand.vmem [shape: f32[2,64,52], index: 9, kind: output, shape index: {}]
  %s10 = sld [smem:[#allocation0]]
  $region69: #{aerca_forward.3} parent=0
    _
  %s12 = ssub.s32 1, %s10
  %s13 = scalar_select 0, %s12, %s10
  loop: start=0, step=1, limit=4
  $region2: #{aerca_forward.3} parent=0 // loop_pre_header
    _
  $region3: #{aerca_forward.3} parent=0 // loop_header
    %s15 = sphi 0, %s19
    %p16 = scmp.ge.s32.totalorder %s15, 4
    %s22 = sphi 0, %s34
    %s23 = sphi 0, %s30
    %s24 = sphi 0, %s22
    %s25 = sphi 0, %s23
    %s26 = sphi 0, %s24
    %s27 = sphi 0, %s25
    %s39 = sphi 0, %s41
    %s42 = sphi 0, %s39
    %s43 = sphi 0, %s42
    %s59 = sphi 0, %s43
    %s65 = sphi 0, %s67
    %s68 = sphi 0, %s65
    %s69 = sphi 0, %s68
    %s85 = sphi 0, %s69
    %s91 = sphi 0, %s93
    %s94 = sphi 0, %s91
    %s95 = sphi 0, %s94
    %s111 = sphi 0, %s95
    %s117 = sphi 0, %s119
    %s120 = sphi 0, %s117
    %s121 = sphi 0, %s120
    %s137 = sphi 0, %s121
    %s143 = sphi 0, %s145
    %s146 = sphi 0, %s143
    %s147 = sphi 0, %s146
    %s163 = sphi 0, %s147
    %s169 = sphi 0, %s171
    %s172 = sphi 0, %s169
    %s173 = sphi 0, %s172
    %s189 = sphi 0, %s173
    %s195 = sphi 0, %s197
    %s198 = sphi 0, %s195
    %s199 = sphi 0, %s198
    %s215 = sphi 0, %s199
    %s219 = sphi 0, %s219
    %s221 = sphi 0, %s219
    %s222 = sphi 0, %s221
    %s236 = sphi 0, %s222
    %s240 = sphi 0, %s240
    %s242 = sphi 0, %s240
    %s243 = sphi 0, %s242
    %s257 = sphi 0, %s243
    %s265 = sphi 0, %s267
    %s268 = sphi 0, %s265
    %s269 = sphi 0, %s268
    %s285 = sphi 0, %s269
  $region4: #{aerca_forward.3} parent=0 // loop_header_branch
    %18 = sbr.rel (%p16) target = $region8
  $region5: #{aerca_forward.3} parent=0 // loop_body
    %s20 = ssub.s32 %s15, 1
    %s21 = ssub.s32 %s15, 2
    %s28 = sadd.s32 1, %s23
    %p29 = scmp.ge.s32.totalorder %s28, 1
    %s30 = scalar_select %p29, 0, %s28
    %s31 = sadd.s32 1, %s22
    %s32 = scalar_select %p29, %s31, %s22
    %p33 = scmp.ge.s32.totalorder %s32, 2
    %s34 = scalar_select %p33, 0, %s32
    %s35 = ssub.s32 %s22, %s34
    %s36 = ssub.s32 %s23, %s30
    %s37 = sor.u32 %s35, %s36
    %p38 = scmp.eq.s32.totalorder %s37, 0
    %s40 = sadd.s32 %s39, 1
    %s41 = scalar_select %p38, %s39, %s40
    %p44 = pneg %p38
    %p45 = scmp.eq.s32.totalorder %s15, 1
    %p46 = por %p44, %p45
    %p47 = scmp.ne.s32.totalorder %s39, %s42
    %p48 = scmp.eq.s32.totalorder %s15, 0
    %p49 = por %p47, %p48
    %p50 = scmp.ne.s32.totalorder %s39, %s42
    %p51 = scmp.eq.s32.totalorder %s20, 1
    %p52 = por %p50, %p51
    %p53 = scmp.ne.s32.totalorder %s42, %s43
    %p54 = scmp.eq.s32.totalorder %s20, 0
    %p55 = por %p53, %p54
    %p56 = scmp.ne.s32.totalorder %s42, %s43
    %p57 = scmp.eq.s32.totalorder %s21, 1
    %p58 = por %p56, %p57
    %p60 = scmp.ne.s32.totalorder %s43, %s59
    %p61 = scmp.eq.s32.totalorder %s21, 0
    %p62 = por %p60, %p61
    %s63 = ssub.s32 %s22, %s34
    %p64 = scmp.eq.s32.totalorder %s63, 0
    %s66 = sadd.s32 %s65, 1
    %s67 = scalar_select %p64, %s65, %s66
    %p70 = pneg %p64
    %p71 = scmp.eq.s32.totalorder %s15, 1
    %p72 = por %p70, %p71
    %p73 = scmp.ne.s32.totalorder %s65, %s68
    %p74 = scmp.eq.s32.totalorder %s15, 0
    %p75 = por %p73, %p74
    %p76 = scmp.ne.s32.totalorder %s65, %s68
    %p77 = scmp.eq.s32.totalorder %s20, 1
    %p78 = por %p76, %p77
    %p79 = scmp.ne.s32.totalorder %s68, %s69
    %p80 = scmp.eq.s32.totalorder %s20, 0
    %p81 = por %p79, %p80
    %p82 = scmp.ne.s32.totalorder %s68, %s69
    %p83 = scmp.eq.s32.totalorder %s21, 1
    %p84 = por %p82, %p83
    %p86 = scmp.ne.s32.totalorder %s69, %s85
    %p87 = scmp.eq.s32.totalorder %s21, 0
    %p88 = por %p86, %p87
    %s89 = ssub.s32 %s22, %s34
    %p90 = scmp.eq.s32.totalorder %s89, 0
    %s92 = sadd.s32 %s91, 1
    %s93 = scalar_select %p90, %s91, %s92
    %p96 = pneg %p90
    %p97 = scmp.eq.s32.totalorder %s15, 1
    %p98 = por %p96, %p97
    %p99 = scmp.ne.s32.totalorder %s91, %s94
    %p100 = scmp.eq.s32.totalorder %s15, 0
    %p101 = por %p99, %p100
    %p102 = scmp.ne.s32.totalorder %s91, %s94
    %p103 = scmp.eq.s32.totalorder %s20, 1
    %p104 = por %p102, %p103
    %p105 = scmp.ne.s32.totalorder %s94, %s95
    %p106 = scmp.eq.s32.totalorder %s20, 0
    %p107 = por %p105, %p106
    %p108 = scmp.ne.s32.totalorder %s94, %s95
    %p109 = scmp.eq.s32.totalorder %s21, 1
    %p110 = por %p108, %p109
    %p112 = scmp.ne.s32.totalorder %s95, %s111
    %p113 = scmp.eq.s32.totalorder %s21, 0
    %p114 = por %p112, %p113
    %s115 = ssub.s32 %s22, %s34
    %p116 = scmp.eq.s32.totalorder %s115, 0
    %s118 = sadd.s32 %s117, 1
    %s119 = scalar_select %p116, %s117, %s118
    %p122 = pneg %p116
    %p123 = scmp.eq.s32.totalorder %s15, 1
    %p124 = por %p122, %p123
    %p125 = scmp.ne.s32.totalorder %s117, %s120
    %p126 = scmp.eq.s32.totalorder %s15, 0
    %p127 = por %p125, %p126
    %p128 = scmp.ne.s32.totalorder %s117, %s120
    %p129 = scmp.eq.s32.totalorder %s20, 1
    %p130 = por %p128, %p129
    %p131 = scmp.ne.s32.totalorder %s120, %s121
    %p132 = scmp.eq.s32.totalorder %s20, 0
    %p133 = por %p131, %p132
    %p134 = scmp.ne.s32.totalorder %s120, %s121
    %p135 = scmp.eq.s32.totalorder %s21, 1
    %p136 = por %p134, %p135
    %p138 = scmp.ne.s32.totalorder %s121, %s137
    %p139 = scmp.eq.s32.totalorder %s21, 0
    %p140 = por %p138, %p139
    %s141 = ssub.s32 %s22, %s34
    %p142 = scmp.eq.s32.totalorder %s141, 0
    %s144 = sadd.s32 %s143, 1
    %s145 = scalar_select %p142, %s143, %s144
    %p148 = pneg %p142
    %p149 = scmp.eq.s32.totalorder %s15, 1
    %p150 = por %p148, %p149
    %p151 = scmp.ne.s32.totalorder %s143, %s146
    %p152 = scmp.eq.s32.totalorder %s15, 0
    %p153 = por %p151, %p152
    %p154 = scmp.ne.s32.totalorder %s143, %s146
    %p155 = scmp.eq.s32.totalorder %s20, 1
    %p156 = por %p154, %p155
    %p157 = scmp.ne.s32.totalorder %s146, %s147
    %p158 = scmp.eq.s32.totalorder %s20, 0
    %p159 = por %p157, %p158
    %p160 = scmp.ne.s32.totalorder %s146, %s147
    %p161 = scmp.eq.s32.totalorder %s21, 1
    %p162 = por %p160, %p161
    %p164 = scmp.ne.s32.totalorder %s147, %s163
    %p165 = scmp.eq.s32.totalorder %s21, 0
    %p166 = por %p164, %p165
    %s167 = ssub.s32 %s22, %s34
    %p168 = scmp.eq.s32.totalorder %s167, 0
    %s170 = sadd.s32 %s169, 1
    %s171 = scalar_select %p168, %s169, %s170
    %p174 = pneg %p168
    %p175 = scmp.eq.s32.totalorder %s15, 1
    %p176 = por %p174, %p175
    %p177 = scmp.ne.s32.totalorder %s169, %s172
    %p178 = scmp.eq.s32.totalorder %s15, 0
    %p179 = por %p177, %p178
    %p180 = scmp.ne.s32.totalorder %s169, %s172
    %p181 = scmp.eq.s32.totalorder %s20, 1
    %p182 = por %p180, %p181
    %p183 = scmp.ne.s32.totalorder %s172, %s173
    %p184 = scmp.eq.s32.totalorder %s20, 0
    %p185 = por %p183, %p184
    %p186 = scmp.ne.s32.totalorder %s172, %s173
    %p187 = scmp.eq.s32.totalorder %s21, 1
    %p188 = por %p186, %p187
    %p190 = scmp.ne.s32.totalorder %s173, %s189
    %p191 = scmp.eq.s32.totalorder %s21, 0
    %p192 = por %p190, %p191
    %s193 = ssub.s32 %s22, %s34
    %p194 = scmp.eq.s32.totalorder %s193, 0
    %s196 = sadd.s32 %s195, 1
    %s197 = scalar_select %p194, %s195, %s196
    %p200 = pneg %p194
    %p201 = scmp.eq.s32.totalorder %s15, 1
    %p202 = por %p200, %p201
    %p203 = scmp.ne.s32.totalorder %s195, %s198
    %p204 = scmp.eq.s32.totalorder %s15, 0
    %p205 = por %p203, %p204
    %p206 = scmp.ne.s32.totalorder %s195, %s198
    %p207 = scmp.eq.s32.totalorder %s20, 1
    %p208 = por %p206, %p207
    %p209 = scmp.ne.s32.totalorder %s198, %s199
    %p210 = scmp.eq.s32.totalorder %s20, 0
    %p211 = por %p209, %p210
    %p212 = scmp.ne.s32.totalorder %s198, %s199
    %p213 = scmp.eq.s32.totalorder %s21, 1
    %p214 = por %p212, %p213
    %p216 = scmp.ne.s32.totalorder %s199, %s215
    %p217 = scmp.eq.s32.totalorder %s21, 0
    %p218 = por %p216, %p217
    %s220 = sadd.s32 %s219, 1
    %p223 = scmp.eq.s32.totalorder %s15, 1
    %p224 = scmp.ne.s32.totalorder %s219, %s221
    %p225 = scmp.eq.s32.totalorder %s15, 0
    %p226 = por %p224, %p225
    %p227 = scmp.ne.s32.totalorder %s219, %s221
    %p228 = scmp.eq.s32.totalorder %s20, 1
    %p229 = por %p227, %p228
    %p230 = scmp.ne.s32.totalorder %s221, %s222
    %p231 = scmp.eq.s32.totalorder %s20, 0
    %p232 = por %p230, %p231
    %p233 = scmp.ne.s32.totalorder %s221, %s222
    %p234 = scmp.eq.s32.totalorder %s21, 1
    %p235 = por %p233, %p234
    %p237 = scmp.ne.s32.totalorder %s222, %s236
    %p238 = scmp.eq.s32.totalorder %s21, 0
    %p239 = por %p237, %p238
    %s241 = sadd.s32 %s240, 1
    %p244 = scmp.eq.s32.totalorder %s15, 1
    %p245 = scmp.ne.s32.totalorder %s240, %s242
    %p246 = scmp.eq.s32.totalorder %s15, 0
    %p247 = por %p245, %p246
    %p248 = scmp.ne.s32.totalorder %s240, %s242
    %p249 = scmp.eq.s32.totalorder %s20, 1
    %p250 = por %p248, %p249
    %p251 = scmp.ne.s32.totalorder %s242, %s243
    %p252 = scmp.eq.s32.totalorder %s20, 0
    %p253 = por %p251, %p252
    %p254 = scmp.ne.s32.totalorder %s242, %s243
    %p255 = scmp.eq.s32.totalorder %s21, 1
    %p256 = por %p254, %p255
    %p258 = scmp.ne.s32.totalorder %s243, %s257
    %p259 = scmp.eq.s32.totalorder %s21, 0
    %p260 = por %p258, %p259
    %s261 = ssub.s32 %s22, %s34
    %s262 = ssub.s32 %s23, %s30
    %s263 = sor.u32 %s261, %s262
    %p264 = scmp.eq.s32.totalorder %s263, 0
    %s266 = sadd.s32 %s265, 1
    %s267 = scalar_select %p264, %s265, %s266
    %p270 = pneg %p264
    %p271 = scmp.eq.s32.totalorder %s15, 1
    %p272 = por %p270, %p271
    %p273 = scmp.ne.s32.totalorder %s265, %s268
    %p274 = scmp.eq.s32.totalorder %s15, 0
    %p275 = por %p273, %p274
    %p276 = scmp.ne.s32.totalorder %s265, %s268
    %p277 = scmp.eq.s32.totalorder %s20, 1
    %p278 = por %p276, %p277
    %p279 = scmp.ne.s32.totalorder %s268, %s269
    %p280 = scmp.eq.s32.totalorder %s20, 0
    %p281 = por %p279, %p280
    %p282 = scmp.ne.s32.totalorder %s268, %s269
    %p283 = scmp.eq.s32.totalorder %s21, 1
    %p284 = por %p282, %p283
    %p286 = scmp.ne.s32.totalorder %s269, %s285
    %p287 = scmp.eq.s32.totalorder %s21, 0
    %p288 = por %p286, %p287
    %p289 = scmp.le.s32.totalorder 1, %s15
    %p290 = scmp.lt.s32.totalorder %s15, 3
    %p291 = pnand %p289, %p290
    %p292 = pneg %p291
    // Predicated region
    $region9: #{aerca_forward.3} parent=5 // pred_check
      _
    $region10: #{aerca_forward.3} parent=5 // pred_check_branch
      %294 = sbr.rel (%p291) target = $region12
    $region11: #{aerca_forward.3} parent=5 // pred_region
      %s295 = ssub.s32 %s15, 1
      // Predicated region
      $region13: #{aerca_forward.3} parent=11 // pred_check
        %p296 = pneg %p232
      $region14: #{aerca_forward.3} parent=11 // pred_check_branch
        %298 = sbr.rel (%p296) target = $region16
      $region15: #{aerca_forward.3} parent=11 // pred_region
        _
      $region16: #{aerca_forward.3} parent=11 // pred_fallthru
        _
      // Predicated region
      $region17: #{aerca_forward.3} parent=11 // pred_check
        %p299 = pneg %p253
      $region18: #{aerca_forward.3} parent=11 // pred_check_branch
        %301 = sbr.rel (%p299) target = $region20
      $region19: #{aerca_forward.3} parent=11 // pred_region
        _
      $region20: #{aerca_forward.3} parent=11 // pred_fallthru
        _
    $region12: #{aerca_forward.3} parent=5 // pred_fallthru
      _
    %p302 = scmp.lt.s32.totalorder %s15, 2
    // Predicated region
    $region21: #{aerca_forward.3} parent=5 // pred_check
      %p303 = pneg %p302
    $region22: #{aerca_forward.3} parent=5 // pred_check_branch
      %305 = sbr.rel (%p303) target = $region24
    $region23: #{aerca_forward.3} parent=5 // pred_region
      // Predicated region
      $region25: #{aerca_forward.3} parent=23 // pred_check
        %p306 = pneg %p49
      $region26: #{aerca_forward.3} parent=23 // pred_check_branch
        %308 = sbr.rel (%p306) target = $region28
      $region27: #{aerca_forward.3} parent=23 // pred_region
        %s309 = smul.u32 8, %s23
        %p310 = scmp.lt.s32.totalorder %s22, 1
        %s311 = scalar_select %p310, %s22, 1
        %p312 = scmp.lt.s32.totalorder %s309, 7
        %s313 = scalar_select %p312, %s309, 7
        %s314 = smul.addr %s311, 8
        %s315 = sadd.s32 %s313, %s314
        %s316 = smul.addr %s315, 8
        %s317 = scalar_lea.vmem %s0, %s316
        %s318 = smul.u32 8, %s23
      $region28: #{aerca_forward.3} parent=23 // pred_fallthru
        _
      // Predicated region
      $region29: #{aerca_forward.3} parent=23 // pred_check
        %p319 = pneg %p75
      $region30: #{aerca_forward.3} parent=23 // pred_check_branch
        %321 = sbr.rel (%p319) target = $region32
      $region31: #{aerca_forward.3} parent=23 // pred_region
        %p322 = scmp.lt.s32.totalorder %s22, 1
        %s323 = scalar_select %p322, %s22, 1
        %s324 = smul.addr %s323, 2
        %s325 = smul.addr %s324, 8
        %s326 = scalar_lea.vmem %s1, %s325
      $region32: #{aerca_forward.3} parent=23 // pred_fallthru
        _
      // Predicated region
      $region33: #{aerca_forward.3} parent=23 // pred_check
        %p327 = pneg %p101
      $region34: #{aerca_forward.3} parent=23 // pred_check_branch
        %329 = sbr.rel (%p327) target = $region36
      $region35: #{aerca_forward.3} parent=23 // pred_region
        %p330 = scmp.lt.s32.totalorder %s22, 1
        %s331 = scalar_select %p330, %s22, 1
        %s332 = scalar_lea.vmem %s2, %s331
      $region36: #{aerca_forward.3} parent=23 // pred_fallthru
        _
      // Predicated region
      $region37: #{aerca_forward.3} parent=23 // pred_check
        %p333 = pneg %p127
      $region38: #{aerca_forward.3} parent=23 // pred_check_branch
        %335 = sbr.rel (%p333) target = $region40
      $region39: #{aerca_forward.3} parent=23 // pred_region
        %p336 = scmp.lt.s32.totalorder %s22, 1
        %s337 = scalar_select %p336, %s22, 1
        %s338 = smul.addr %s337, 12
        %s339 = smul.addr %s338, 8
        %s340 = scalar_lea.vmem %s3, %s339
      $region40: #{aerca_forward.3} parent=23 // pred_fallthru
        _
      // Predicated region
      $region41: #{aerca_forward.3} parent=23 // pred_check
        %p341 = pneg %p153
      $region42: #{aerca_forward.3} parent=23 // pred_check_branch
        %343 = sbr.rel (%p341) target = $region44
      $region43: #{aerca_forward.3} parent=23 // pred_region
        %p344 = scmp.lt.s32.totalorder %s22, 1
        %s345 = scalar_select %p344, %s22, 1
        %s346 = scalar_lea.vmem %s4, %s345
      $region44: #{aerca_forward.3} parent=23 // pred_fallthru
        _
      // Predicated region
      $region45: #{aerca_forward.3} parent=23 // pred_check
        %p347 = pneg %p179
      $region46: #{aerca_forward.3} parent=23 // pred_check_branch
        %349 = sbr.rel (%p347) target = $region48
      $region47: #{aerca_forward.3} parent=23 // pred_region
        %p350 = scmp.lt.s32.totalorder %s22, 1
        %s351 = scalar_select %p350, %s22, 1
        %s352 = smul.addr %s351, 12
        %s353 = smul.addr %s352, 8
        %s354 = scalar_lea.vmem %s5, %s353
      $region48: #{aerca_forward.3} parent=23 // pred_fallthru
        _
      // Predicated region
      $region49: #{aerca_forward.3} parent=23 // pred_check
        %p355 = pneg %p205
      $region50: #{aerca_forward.3} parent=23 // pred_check_branch
        %357 = sbr.rel (%p355) target = $region52
      $region51: #{aerca_forward.3} parent=23 // pred_region
        %p358 = scmp.lt.s32.totalorder %s22, 1
        %s359 = scalar_select %p358, %s22, 1
        %s360 = scalar_lea.vmem %s6, %s359
      $region52: #{aerca_forward.3} parent=23 // pred_fallthru
        _
    $region24: #{aerca_forward.3} parent=5 // pred_fallthru
      _
    %p361 = scmp.le.s32.totalorder 1, %s15
    %p362 = scmp.lt.s32.totalorder %s15, 3
    %p363 = pnand %p361, %p362
    %p364 = pneg %p363
    // Predicated region
    $region53: #{aerca_forward.3} parent=5 // pred_check
      _
    $region54: #{aerca_forward.3} parent=5 // pred_check_branch
      %366 = sbr.rel (%p363) target = $region56
    $region55: #{aerca_forward.3} parent=5 // pred_region
      %s367 = ssub.s32 %s15, 1
      %s368 = smul.u32 8, %s25
      %p369 = scmp.lt.s32.totalorder %s24, 1
      %s370 = scalar_select %p369, %s24, 1
      %p371 = scmp.lt.s32.totalorder %s368, 7
      %s372 = scalar_select %p371, %s368, 7
      %s373 = smul.addr %s370, 8
      %s374 = sadd.s32 %s372, %s373
      %s375 = smul.addr %s374, 8
      %s376 = scalar_lea.vmem %s0, %s375
      %p377 = pneg %p55
      %p378 = pneg %p52
      %p379 = scmp.lt.s32.totalorder %s24, 1
      %s380 = scalar_select %p379, %s24, 1
      %s381 = smul.addr %s380, 2
      %s382 = smul.addr %s381, 8
      %s383 = scalar_lea.vmem %s1, %s382
      %p384 = pneg %p81
      %p385 = pneg %p78
      %p386 = scmp.lt.s32.totalorder %s24, 1
      %s387 = scalar_select %p386, %s24, 1
      %s388 = scalar_lea.vmem %s2, %s387
      %p389 = pneg %p107
      %p390 = pneg %p104
      %p391 = scmp.lt.s32.totalorder %s24, 1
      %s392 = scalar_select %p391, %s24, 1
      %s393 = smul.addr %s392, 12
      %s394 = smul.addr %s393, 8
      %s395 = scalar_lea.vmem %s3, %s394
      %p396 = pneg %p133
      %p397 = pneg %p130
      %p398 = scmp.lt.s32.totalorder %s24, 1
      %s399 = scalar_select %p398, %s24, 1
      %s400 = scalar_lea.vmem %s4, %s399
      %p401 = pneg %p159
      %p402 = pneg %p156
      %p403 = scmp.lt.s32.totalorder %s24, 1
      %s404 = scalar_select %p403, %s24, 1
      %s405 = smul.addr %s404, 12
      %s406 = smul.addr %s405, 8
      %s407 = scalar_lea.vmem %s5, %s406
      %p408 = pneg %p185
      %p409 = pneg %p182
      %p410 = scmp.lt.s32.totalorder %s24, 1
      %s411 = scalar_select %p410, %s24, 1
      %s412 = scalar_lea.vmem %s6, %s411
      %p413 = pneg %p211
      %p414 = pneg %p208
      %p415 = pneg %p232
      %p416 = pneg %p229
      %p417 = pneg %p253
      %p418 = pneg %p250
      %p419 = pneg %p281
      %p420 = pneg %p278
      %s421 = smul.u32 8, %s25
      %p422 = scmp.lt.s32.totalorder %s24, 1
      %s423 = scalar_select %p422, %s24, 1
      %p424 = scmp.lt.s32.totalorder %s421, 7
      %s425 = scalar_select %p424, %s421, 7
      %s426 = smul.addr %s423, 8
      %s427 = sadd.s32 %s425, %s426
      %s428 = smul.addr %s427, 8
      %s429 = scalar_lea.vmem %s9, %s428
      %s430 = smul.u32 8, %s25
      %p431 = scmp.lt.s32.totalorder %s24, 1
      %s432 = scalar_select %p431, %s24, 1
      %p433 = scmp.lt.s32.totalorder %s430, 7
      %s434 = scalar_select %p433, %s430, 7
      %s435 = smul.addr %s432, 8
      %s436 = sadd.s32 %s434, %s435
      %s437 = smul.addr %s436, 8
      %s438 = scalar_lea.vmem %s0, %s437
      %s439 = smul.u32 8, %s25
      %p440 = scmp.lt.s32.totalorder %s24, 1
      %s441 = scalar_select %p440, %s24, 1
      %s442 = smul.addr %s441, 2
      %s443 = smul.addr %s442, 8
      %s444 = scalar_lea.vmem %s1, %s443
      %p445 = scmp.lt.s32.totalorder %s24, 1
      %s446 = scalar_select %p445, %s24, 1
      %s447 = scalar_lea.vmem %s2, %s446
      %p448 = scmp.lt.s32.totalorder %s24, 1
      %s449 = scalar_select %p448, %s24, 1
      %s450 = smul.addr %s449, 12
      %s451 = smul.addr %s450, 8
      %s452 = scalar_lea.vmem %s3, %s451
      %p453 = scmp.lt.s32.totalorder %s24, 1
      %s454 = scalar_select %p453, %s24, 1
      %s455 = scalar_lea.vmem %s4, %s454
      %p456 = scmp.lt.s32.totalorder %s24, 1
      %s457 = scalar_select %p456, %s24, 1
      %s458 = smul.addr %s457, 12
      %s459 = smul.addr %s458, 8
      %s460 = scalar_lea.vmem %s5, %s459
      %p461 = scmp.lt.s32.totalorder %s24, 1
      %s462 = scalar_select %p461, %s24, 1
      %s463 = scalar_lea.vmem %s6, %s462
      %s464 = smul.u32 8, %s25
      %p465 = scmp.lt.s32.totalorder %s24, 1
      %s466 = scalar_select %p465, %s24, 1
      %p467 = scmp.lt.s32.totalorder %s464, 7
      %s468 = scalar_select %p467, %s464, 7
      %s469 = smul.addr %s466, 8
      %s470 = sadd.s32 %s468, %s469
      %s471 = smul.addr %s470, 8
      %s472 = scalar_lea.vmem %s9, %s471
      %s473 = smul.u32 8, %s25
      %v474 = vld [vmem:[%s438] sm:$0xff]
      %v475 = vld [vmem:[%s438 + $0x8] sm:$0xff]
      %v476 = vld [vmem:[%s438 + $0x10] sm:$0xff]
      %v477 = vld [vmem:[%s438 + $0x18] sm:$0xff]
      %v478 = vld [vmem:[%s438 + $0x20] sm:$0xff]
      %v479 = vld [vmem:[%s438 + $0x28] sm:$0xff]
      %v480 = vld [vmem:[%s438 + $0x30] sm:$0xff]
      %v481 = vld [vmem:[%s438 + $0x38] sm:$0xff]
      %v482 = vld [vmem:[%s444] sm:$0xff]
      %v483 = vld [vmem:[%s444 + $0x8] sm:$0xf]
      %v484 = vld [vmem:[%s447] sm:$0x1]
      %v486 = vlaneseq
      %v487 = vshrl.u32 %v486, 7
      %v488 = vsub.s32 0, %v487
      %v489 = vrot.slane %v484, %v488
      %vm491 = vcmask 97280
      %v493 = vsel %vm491, %v474, 0
      %v496 = vsel %vm491, %v475, 0
      %v499 = vsel %vm491, %v476, 0
      %v502 = vsel %vm491, %v477, 0
      %v505 = vsel %vm491, %v478, 0
      %v508 = vsel %vm491, %v479, 0
      %v511 = vsel %vm491, %v480, 0
      %v514 = vsel %vm491, %v481, 0
      %vm516 = vcmask 1043456
      %v518 = vsel %vm516, %v483, 0
      %520 = vmatprep.subr.mxu0 0.0
      %521 = vmatpush1.msra.mxu0 %v482
      %522 = vmatprep.subr.mxu0 0.0
      %523 = vmatpush1.msra.mxu0 %v518
      %524 = vmatprep.subr.mxu0 0.0
      %525 = vmatpush1.msra.mxu0 0.0
      %526 = vmatprep.subr.mxu0 0.0
      %527 = vmatpush1.msra.mxu0 0.0
      %528 = vmatprep.subr.mxu0 0.0
      %529 = vmatpush1.msra.mxu0 0.0
      %530 = vmatprep.subr.mxu0 0.0
      %531 = vmatpush1.msra.mxu0 0.0
      %532 = vmatprep.subr.mxu0 0.0
      %533 = vmatpush1.msra.mxu0 0.0
      %534 = vmatprep.subr.mxu0 0.0
      %535 = vmatpush1.msra.mxu0 0.0
      %536 = vmatprep.subr.mxu0 0.0
      %537 = vmatpush1.msra.mxu0 0.0
      %538 = vmatprep.subr.mxu0 0.0
      %539 = vmatpush1.msra.mxu0 0.0
      %540 = vmatprep.subr.mxu0 0.0
      %541 = vmatpush1.msra.mxu0 0.0
      %542 = vmatprep.subr.mxu0 0.0
      %543 = vmatpush1.msra.mxu0 0.0
      %544 = vmatprep.subr.mxu0 0.0
      %545 = vmatpush1.msra.mxu0 0.0
      %546 = vmatprep.subr.mxu0 0.0
      %547 = vmatpush1.msra.mxu0 0.0
      %548 = vmatprep.subr.mxu0 0.0
      %549 = vmatpush1.msra.mxu0 0.0
      %550 = vmatprep.subr.mxu0 0.0
      %551 = vmatpush1.msra.mxu0 0.0
      %552 = vmatprep.subr.mxu0 0.0
      %553 = vmatpush1.msra.mxu0 0.0
      %554 = vmatprep.subr.mxu0 0.0
      %555 = vmatpush1.msra.mxu0 0.0
      %556 = vmatprep.subr.mxu0 0.0
      %557 = vmatpush1.msra.mxu0 0.0
      %558 = vmatprep.subr.mxu0 0.0
      %559 = vmatpush1.msra.mxu0 0.0
      %560 = vmatprep.subr.mxu0 0.0
      %561 = vmatpush1.msra.mxu0 0.0
      %562 = vmatprep.subr.mxu0 0.0
      %563 = vmatpush1.msra.mxu0 0.0
      %564 = vmatprep.subr.mxu0 0.0
      %565 = vmatpush1.msra.mxu0 0.0
      %566 = vmatprep.subr.mxu0 0.0
      %567 = vmatpush1.msra.mxu0 0.0
      %568 = vmatprep.subr.mxu0 0.0
      %569 = vmatpush1.msra.mxu0 0.0
      %570 = vmatprep.subr.mxu0 0.0
      %571 = vmatpush1.msra.mxu0 0.0
      %572 = vmatprep.subr.mxu0 0.0
      %573 = vmatpush1.msra.mxu0 0.0
      %574 = vmatprep.subr.mxu0 0.0
      %575 = vmatpush1.msra.mxu0 0.0
      %576 = vmatprep.subr.mxu0 0.0
      %577 = vmatpush1.msra.mxu0 0.0
      %578 = vmatprep.subr.mxu0 0.0
      %579 = vmatpush1.msra.mxu0 0.0
      %580 = vmatprep.subr.mxu0 0.0
      %581 = vmatpush1.msra.mxu0 0.0
      %582 = vmatprep.subr.mxu0 0.0
      %583 = vmatpush1.msra.mxu0 0.0
      %584 = vmatprep.mubr.f32.mxu0 0.0
      %585 = vmatmul.mubr.f32.gmra.mrb[0].mxu0 %v493
      %v586 = vpop.f32.mrb[0].mxu0
      %v587 = vadd.f32 %v489, %v586
      %v588 = vpop.f32.mrb[0].mxu0
      %589 = vmatprep.mubr.f32.mxu0 0.0
      %590 = vmatmul.mubr.f32.gmra.mrb[0].mxu0 %v496
      %v591 = vpop.f32.mrb[0].mxu0
      %v592 = vadd.f32 %v489, %v591
      %v593 = vpop.f32.mrb[0].mxu0
      %594 = vmatprep.mubr.f32.mxu0 0.0
      %595 = vmatmul.mubr.f32.gmra.mrb[0].mxu0 %v499
      %v596 = vpop.f32.mrb[0].mxu0
      %v597 = vadd.f32 %v489, %v596
      %v598 = vpop.f32.mrb[0].mxu0
      %599 = vmatprep.mubr.f32.mxu0 0.0
      %600 = vmatmul.mubr.f32.gmra.mrb[0].mxu0 %v502
      %v601 = vpop.f32.mrb[0].mxu0
      %v602 = vadd.f32 %v489, %v601
      %v603 = vpop.f32.mrb[0].mxu0
      %604 = vmatprep.mubr.f32.mxu0 0.0
      %605 = vmatmul.mubr.f32.gmra.mrb[0].mxu0 %v505
      %v606 = vpop.f32.mrb[0].mxu0
      %v607 = vadd.f32 %v489, %v606
      %v608 = vpop.f32.mrb[0].mxu0
      %609 = vmatprep.mubr.f32.mxu0 0.0
      %610 = vmatmul.mubr.f32.gmra.mrb[0].mxu0 %v508
      %v611 = vpop.f32.mrb[0].mxu0
      %v612 = vadd.f32 %v489, %v611
      %v613 = vpop.f32.mrb[0].mxu0
      %614 = vmatprep.mubr.f32.mxu0 0.0
      %615 = vmatmul.mubr.f32.gmra.mrb[0].mxu0 %v511
      %v616 = vpop.f32.mrb[0].mxu0
      %v617 = vadd.f32 %v489, %v616
      %v618 = vpop.f32.mrb[0].mxu0
      %619 = vmatprep.mubr.f32.mxu0 0.0
      %620 = vmatmul.mubr.f32.gmra.mrb[0].mxu0 %v514
      %v621 = vpop.f32.mrb[0].mxu0
      %v622 = vadd.f32 %v489, %v621
      %v623 = vpop.f32.mrb[0].mxu0
      %624 = vdwg.mxu0
      %v625 = vmax.f32 %v587, 0.0
      %v626 = vmax.f32 %v592, 0.0
      %v627 = vmax.f32 %v597, 0.0
      %v628 = vmax.f32 %v602, 0.0
      %v629 = vmax.f32 %v607, 0.0
      %v630 = vmax.f32 %v612, 0.0
      %v631 = vmax.f32 %v617, 0.0
      %v632 = vmax.f32 %v622, 0.0
      %v633 = vld [vmem:[%s452] sm:$0xff]
      %v634 = vld [vmem:[%s452 + $0x8] sm:$0xff]
      %v635 = vld [vmem:[%s452 + $0x10] sm:$0xff]
      %v636 = vld [vmem:[%s452 + $0x18] sm:$0xff]
      %v637 = vld [vmem:[%s452 + $0x20] sm:$0xff]
      %v638 = vld [vmem:[%s452 + $0x28] sm:$0xff]
      %v639 = vld [vmem:[%s452 + $0x30] sm:$0xff]
      %v640 = vld [vmem:[%s452 + $0x38] sm:$0xff]
      %v641 = vld [vmem:[%s452 + $0x40] sm:$0xff]
      %v642 = vld [vmem:[%s452 + $0x48] sm:$0xff]
      %v643 = vld [vmem:[%s452 + $0x50] sm:$0xff]
      %v644 = vld [vmem:[%s452 + $0x58] sm:$0xff]
      %v645 = vld [vmem:[%s455] sm:$0x1]
      %v647 = vlaneseq
      %v648 = vshrl.u32 %v647, 7
      %v649 = vsub.s32 0, %v648
      %v650 = vrot.slane %v645, %v649
      %vm652 = vcmask 785408
      %v654 = vsel %vm652, %v625, 0
      %v657 = vsel %vm652, %v626, 0
      %v660 = vsel %vm652, %v627, 0
      %v663 = vsel %vm652, %v628, 0
      %v666 = vsel %vm652, %v629, 0
      %v669 = vsel %vm652, %v630, 0
      %v672 = vsel %vm652, %v631, 0
      %v675 = vsel %vm652, %v632, 0
      %677 = vmatprep.subr.mxu0 0.0
      %678 = vmatpush1.msra.mxu0 %v633
      %679 = vmatprep.subr.mxu0 0.0
      %680 = vmatpush1.msra.mxu0 %v634
      %681 = vmatprep.subr.mxu0 0.0
      %682 = vmatpush1.msra.mxu0 %v635
      %683 = vmatprep.subr.mxu0 0.0
      %684 = vmatpush1.msra.mxu0 %v636
      %685 = vmatprep.subr.mxu0 0.0
      %686 = vmatpush1.msra.mxu0 %v637
      %687 = vmatprep.subr.mxu0 0.0
      %688 = vmatpush1.msra.mxu0 %v638
      %689 = vmatprep.subr.mxu0 0.0
      %690 = vmatpush1.msra.mxu0 %v639
      %691 = vmatprep.subr.mxu0 0.0
      %692 = vmatpush1.msra.mxu0 %v640
      %693 = vmatprep.subr.mxu0 0.0
      %694 = vmatpush1.msra.mxu0 %v641
      %695 = vmatprep.subr.mxu0 0.0
      %696 = vmatpush1.msra.mxu0 %v642
      %697 = vmatprep.subr.mxu0 0.0
      %698 = vmatpush1.msra.mxu0 %v643
      %699 = vmatprep.subr.mxu0 0.0
      %700 = vmatpush1.msra.mxu0 %v644
      %701 = vmatprep.subr.mxu0 0.0
      %702 = vmatpush1.msra.mxu0 0.0
      %703 = vmatprep.subr.mxu0 0.0
      %704 = vmatpush1.msra.mxu0 0.0
      %705 = vmatprep.subr.mxu0 0.0
      %706 = vmatpush1.msra.mxu0 0.0
      %707 = vmatprep.subr.mxu0 0.0
      %708 = vmatpush1.msra.mxu0 0.0
      %709 = vmatprep.subr.mxu0 0.0
      %710 = vmatpush1.msra.mxu0 0.0
      %711 = vmatprep.subr.mxu0 0.0
      %712 = vmatpush1.msra.mxu0 0.0
      %713 = vmatprep.subr.mxu0 0.0
      %714 = vmatpush1.msra.mxu0 0.0
      %715 = vmatprep.subr.mxu0 0.0
      %716 = vmatpush1.msra.mxu0 0.0
      %717 = vmatprep.subr.mxu0 0.0
      %718 = vmatpush1.msra.mxu0 0.0
      %719 = vmatprep.subr.mxu0 0.0
      %720 = vmatpush1.msra.mxu0 0.0
      %721 = vmatprep.subr.mxu0 0.0
      %722 = vmatpush1.msra.mxu0 0.0
      %723 = vmatprep.subr.mxu0 0.0
      %724 = vmatpush1.msra.mxu0 0.0
      %725 = vmatprep.subr.mxu0 0.0
      %726 = vmatpush1.msra.mxu0 0.0
      %727 = vmatprep.subr.mxu0 0.0
      %728 = vmatpush1.msra.mxu0 0.0
      %729 = vmatprep.subr.mxu0 0.0
      %730 = vmatpush1.msra.mxu0 0.0
      %731 = vmatprep.subr.mxu0 0.0
      %732 = vmatpush1.msra.mxu0 0.0
      %733 = vmatprep.subr.mxu0 0.0
      %734 = vmatpush1.msra.mxu0 0.0
      %735 = vmatprep.subr.mxu0 0.0
      %736 = vmatpush1.msra.mxu0 0.0
      %737 = vmatprep.subr.mxu0 0.0
      %738 = vmatpush1.msra.mxu0 0.0
      %739 = vmatprep.subr.mxu0 0.0
      %740 = vmatpush1.msra.mxu0 0.0
      %741 = vmatprep.mubr.f32.mxu0 0.0
      %742 = vmatmul.mubr.f32.gmra.mrb[0].mxu0 %v654
      %v743 = vpop.f32.mrb[0].mxu0
      %v744 = vadd.f32 %v650, %v743
      %v745 = vpop.f32.mrb[0].mxu0
      %746 = vmatprep.mubr.f32.mxu0 0.0
      %747 = vmatmul.mubr.f32.gmra.mrb[0].mxu0 %v657
      %v748 = vpop.f32.mrb[0].mxu0
      %v749 = vadd.f32 %v650, %v748
      %v750 = vpop.f32.mrb[0].mxu0
      %751 = vmatprep.mubr.f32.mxu0 0.0
      %752 = vmatmul.mubr.f32.gmra.mrb[0].mxu0 %v660
      %v753 = vpop.f32.mrb[0].mxu0
      %v754 = vadd.f32 %v650, %v753
      %v755 = vpop.f32.mrb[0].mxu0
      %756 = vmatprep.mubr.f32.mxu0 0.0
      %757 = vmatmul.mubr.f32.gmra.mrb[0].mxu0 %v663
      %v758 = vpop.f32.mrb[0].mxu0
      %v759 = vadd.f32 %v650, %v758
      %v760 = vpop.f32.mrb[0].mxu0
      %761 = vmatprep.mubr.f32.mxu0 0.0
      %762 = vmatmul.mubr.f32.gmra.mrb[0].mxu0 %v666
      %v763 = vpop.f32.mrb[0].mxu0
      %v764 = vadd.f32 %v650, %v763
      %v765 = vpop.f32.mrb[0].mxu0
      %766 = vmatprep.mubr.f32.mxu0 0.0
      %767 = vmatmul.mubr.f32.gmra.mrb[0].mxu0 %v669
      %v768 = vpop.f32.mrb[0].mxu0
      %v769 = vadd.f32 %v650, %v768
      %v770 = vpop.f32.mrb[0].mxu0
      %771 = vmatprep.mubr.f32.mxu0 0.0
      %772 = vmatmul.mubr.f32.gmra.mrb[0].mxu0 %v672
      %v773 = vpop.f32.mrb[0].mxu0
      %v774 = vadd.f32 %v650, %v773
      %v775 = vpop.f32.mrb[0].mxu0
      %776 = vmatprep.mubr.f32.mxu0 0.0
      %777 = vmatmul.mubr.f32.gmra.mrb[0].mxu0 %v675
      %v778 = vpop.f32.mrb[0].mxu0
      %v779 = vadd.f32 %v650, %v778
      %v780 = vpop.f32.mrb[0].mxu0
      %781 = vdwg.mxu0
      %v782 = vmax.f32 %v744, 0.0
      %v783 = vmax.f32 %v749, 0.0
      %v784 = vmax.f32 %v754, 0.0
      %v785 = vmax.f32 %v759, 0.0
      %v786 = vmax.f32 %v764, 0.0
      %v787 = vmax.f32 %v769, 0.0
      %v788 = vmax.f32 %v774, 0.0
      %v789 = vmax.f32 %v779, 0.0
      %v790 = vld [vmem:[%s460] sm:$0xff]
      %v791 = vld [vmem:[%s460 + $0x8] sm:$0xff]
      %v792 = vld [vmem:[%s460 + $0x10] sm:$0xff]
      %v793 = vld [vmem:[%s460 + $0x18] sm:$0xff]
      %v794 = vld [vmem:[%s460 + $0x20] sm:$0xff]
      %v795 = vld [vmem:[%s460 + $0x28] sm:$0xff]
      %v796 = vld [vmem:[%s460 + $0x30] sm:$0xff]
      %v797 = vld [vmem:[%s460 + $0x38] sm:$0xff]
      %v798 = vld [vmem:[%s460 + $0x40] sm:$0xff]
      %v799 = vld [vmem:[%s460 + $0x48] sm:$0xff]
      %v800 = vld [vmem:[%s460 + $0x50] sm:$0xff]
      %v801 = vld [vmem:[%s460 + $0x58] sm:$0xff]
      %v802 = vld [vmem:[%s463] sm:$0x1]
      %v804 = vlaneseq
      %v805 = vshrl.u32 %v804, 7
      %v806 = vsub.s32 0, %v805
      %v807 = vrot.slane %v802, %v806
      %v810 = vsel %vm652, %v782, 0
      %v813 = vsel %vm652, %v783, 0
      %v816 = vsel %vm652, %v784, 0
      %v819 = vsel %vm652, %v785, 0
      %v822 = vsel %vm652, %v786, 0
      %v825 = vsel %vm652, %v787, 0
      %v828 = vsel %vm652, %v788, 0
      %v831 = vsel %vm652, %v789, 0
      %833 = vmatprep.subr.mxu0 0.0
      %834 = vmatpush1.msra.mxu0 %v790
      %835 = vmatprep.subr.mxu0 0.0
      %836 = vmatpush1.msra.mxu0 %v791
      %837 = vmatprep.subr.mxu0 0.0
      %838 = vmatpush1.msra.mxu0 %v792
      %839 = vmatprep.subr.mxu0 0.0
      %840 = vmatpush1.msra.mxu0 %v793
      %841 = vmatprep.subr.mxu0 0.0
      %842 = vmatpush1.msra.mxu0 %v794
      %843 = vmatprep.subr.mxu0 0.0
      %844 = vmatpush1.msra.mxu0 %v795
      %845 = vmatprep.subr.mxu0 0.0
      %846 = vmatpush1.msra.mxu0 %v796
      %847 = vmatprep.subr.mxu0 0.0
      %848 = vmatpush1.msra.mxu0 %v797
      %849 = vmatprep.subr.mxu0 0.0
      %850 = vmatpush1.msra.mxu0 %v798
      %851 = vmatprep.subr.mxu0 0.0
      %852 = vmatpush1.msra.mxu0 %v799
      %853 = vmatprep.subr.mxu0 0.0
      %854 = vmatpush1.msra.mxu0 %v800
      %855 = vmatprep.subr.mxu0 0.0
      %856 = vmatpush1.msra.mxu0 %v801
      %857 = vmatprep.subr.mxu0 0.0
      %858 = vmatpush1.msra.mxu0 0.0
      %859 = vmatprep.subr.mxu0 0.0
      %860 = vmatpush1.msra.mxu0 0.0
      %861 = vmatprep.subr.mxu0 0.0
      %862 = vmatpush1.msra.mxu0 0.0
      %863 = vmatprep.subr.mxu0 0.0
      %864 = vmatpush1.msra.mxu0 0.0
      %865 = vmatprep.subr.mxu0 0.0
      %866 = vmatpush1.msra.mxu0 0.0
      %867 = vmatprep.subr.mxu0 0.0
      %868 = vmatpush1.msra.mxu0 0.0
      %869 = vmatprep.subr.mxu0 0.0
      %870 = vmatpush1.msra.mxu0 0.0
      %871 = vmatprep.subr.mxu0 0.0
      %872 = vmatpush1.msra.mxu0 0.0
      %873 = vmatprep.subr.mxu0 0.0
      %874 = vmatpush1.msra.mxu0 0.0
      %875 = vmatprep.subr.mxu0 0.0
      %876 = vmatpush1.msra.mxu0 0.0
      %877 = vmatprep.subr.mxu0 0.0
      %878 = vmatpush1.msra.mxu0 0.0
      %879 = vmatprep.subr.mxu0 0.0
      %880 = vmatpush1.msra.mxu0 0.0
      %881 = vmatprep.subr.mxu0 0.0
      %882 = vmatpush1.msra.mxu0 0.0
      %883 = vmatprep.subr.mxu0 0.0
      %884 = vmatpush1.msra.mxu0 0.0
      %885 = vmatprep.subr.mxu0 0.0
      %886 = vmatpush1.msra.mxu0 0.0
      %887 = vmatprep.subr.mxu0 0.0
      %888 = vmatpush1.msra.mxu0 0.0
      %889 = vmatprep.subr.mxu0 0.0
      %890 = vmatpush1.msra.mxu0 0.0
      %891 = vmatprep.subr.mxu0 0.0
      %892 = vmatpush1.msra.mxu0 0.0
      %893 = vmatprep.subr.mxu0 0.0
      %894 = vmatpush1.msra.mxu0 0.0
      %895 = vmatprep.subr.mxu0 0.0
      %896 = vmatpush1.msra.mxu0 0.0
      %897 = vmatprep.mubr.f32.mxu0 0.0
      %898 = vmatmul.mubr.f32.gmra.mrb[0].mxu0 %v810
      %v899 = vpop.f32.mrb[0].mxu0
      %v900 = vadd.f32 %v807, %v899
      %v901 = vpop.f32.mrb[0].mxu0
      %902 = vmatprep.mubr.f32.mxu0 0.0
      %903 = vmatmul.mubr.f32.gmra.mrb[0].mxu0 %v813
      %v904 = vpop.f32.mrb[0].mxu0
      %v905 = vadd.f32 %v807, %v904
      %v906 = vpop.f32.mrb[0].mxu0
      %907 = vmatprep.mubr.f32.mxu0 0.0
      %908 = vmatmul.mubr.f32.gmra.mrb[0].mxu0 %v816
      %v909 = vpop.f32.mrb[0].mxu0
      %v910 = vadd.f32 %v807, %v909
      %v911 = vpop.f32.mrb[0].mxu0
      %912 = vmatprep.mubr.f32.mxu0 0.0
      %913 = vmatmul.mubr.f32.gmra.mrb[0].mxu0 %v819
      %v914 = vpop.f32.mrb[0].mxu0
      %v915 = vadd.f32 %v807, %v914
      %v916 = vpop.f32.mrb[0].mxu0
      %917 = vmatprep.mubr.f32.mxu0 0.0
      %918 = vmatmul.mubr.f32.gmra.mrb[0].mxu0 %v822
      %v919 = vpop.f32.mrb[0].mxu0
      %v920 = vadd.f32 %v807, %v919
      %v921 = vpop.f32.mrb[0].mxu0
      %922 = vmatprep.mubr.f32.mxu0 0.0
      %923 = vmatmul.mubr.f32.gmra.mrb[0].mxu0 %v825
      %v924 = vpop.f32.mrb[0].mxu0
      %v925 = vadd.f32 %v807, %v924
      %v926 = vpop.f32.mrb[0].mxu0
      %927 = vmatprep.mubr.f32.mxu0 0.0
      %928 = vmatmul.mubr.f32.gmra.mrb[0].mxu0 %v828
      %v929 = vpop.f32.mrb[0].mxu0
      %v930 = vadd.f32 %v807, %v929
      %v931 = vpop.f32.mrb[0].mxu0
      %932 = vmatprep.mubr.f32.mxu0 0.0
      %933 = vmatmul.mubr.f32.gmra.mrb[0].mxu0 %v831
      %v934 = vpop.f32.mrb[0].mxu0
      %v935 = vadd.f32 %v807, %v934
      %v936 = vpop.f32.mrb[0].mxu0
      %937 = vdwg.mxu0
      %v938 = vld [vmem:[%s7] sm:$0xff]
      %v939 = vld [vmem:[%s7 + $0x8] sm:$0xf]
      %v941 = vsel %vm516, %v939, 0
      %943 = vmatprep.subr.mxu0 0.0
      %944 = vmatpush1.msra.mxu0 %v938
      %945 = vmatprep.subr.mxu0 0.0
      %946 = vmatpush1.msra.mxu0 %v941
      %947 = vmatprep.subr.mxu0 0.0
      %948 = vmatpush1.msra.mxu0 0.0
      %949 = vmatprep.subr.mxu0 0.0
      %950 = vmatpush1.msra.mxu0 0.0
      %951 = vmatprep.subr.mxu0 0.0
      %952 = vmatpush1.msra.mxu0 0.0
      %953 = vmatprep.subr.mxu0 0.0
      %954 = vmatpush1.msra.mxu0 0.0
      %955 = vmatprep.subr.mxu0 0.0
      %956 = vmatpush1.msra.mxu0 0.0
      %957 = vmatprep.subr.mxu0 0.0
      %958 = vmatpush1.msra.mxu0 0.0
      %959 = vmatprep.subr.mxu0 0.0
      %960 = vmatpush1.msra.mxu0 0.0
      %961 = vmatprep.subr.mxu0 0.0
      %962 = vmatpush1.msra.mxu0 0.0
      %963 = vmatprep.subr.mxu0 0.0
      %964 = vmatpush1.msra.mxu0 0.0
      %965 = vmatprep.subr.mxu0 0.0
      %966 = vmatpush1.msra.mxu0 0.0
      %967 = vmatprep.subr.mxu0 0.0
      %968 = vmatpush1.msra.mxu0 0.0
      %969 = vmatprep.subr.mxu0 0.0
      %970 = vmatpush1.msra.mxu0 0.0
      %971 = vmatprep.subr.mxu0 0.0
      %972 = vmatpush1.msra.mxu0 0.0
      %973 = vmatprep.subr.mxu0 0.0
      %974 = vmatpush1.msra.mxu0 0.0
      %975 = vmatprep.subr.mxu0 0.0
      %976 = vmatpush1.msra.mxu0 0.0
      %977 = vmatprep.subr.mxu0 0.0
      %978 = vmatpush1.msra.mxu0 0.0
      %979 = vmatprep.subr.mxu0 0.0
      %980 = vmatpush1.msra.mxu0 0.0
      %981 = vmatprep.subr.mxu0 0.0
      %982 = vmatpush1.msra.mxu0 0.0
      %983 = vmatprep.subr.mxu0 0.0
      %984 = vmatpush1.msra.mxu0 0.0
      %985 = vmatprep.subr.mxu0 0.0
      %986 = vmatpush1.msra.mxu0 0.0
      %987 = vmatprep.subr.mxu0 0.0
      %988 = vmatpush1.msra.mxu0 0.0
      %989 = vmatprep.subr.mxu0 0.0
      %990 = vmatpush1.msra.mxu0 0.0
      %991 = vmatprep.subr.mxu0 0.0
      %992 = vmatpush1.msra.mxu0 0.0
      %993 = vmatprep.subr.mxu0 0.0
      %994 = vmatpush1.msra.mxu0 0.0
      %995 = vmatprep.subr.mxu0 0.0
      %996 = vmatpush1.msra.mxu0 0.0
      %997 = vmatprep.subr.mxu0 0.0
      %998 = vmatpush1.msra.mxu0 0.0
      %999 = vmatprep.subr.mxu0 0.0
      %1000 = vmatpush1.msra.mxu0 0.0
      %1001 = vmatprep.subr.mxu0 0.0
      %1002 = vmatpush1.msra.mxu0 0.0
      %1003 = vmatprep.subr.mxu0 0.0
      %1004 = vmatpush1.msra.mxu0 0.0
      %1005 = vmatprep.subr.mxu0 0.0
      %1006 = vmatpush1.msra.mxu0 0.0
      %1007 = vmatprep.mubr.f32.mxu0 0.0
      %1008 = vmatmul.mubr.f32.gmra.mrb[0].mxu0 %v493
      %v1009 = vpop.f32.mrb[0].mxu0
      %v1010 = vadd.f32 0.0, %v1009
      %v1011 = vpop.f32.mrb[0].mxu0
      %1012 = vmatprep.mubr.f32.mxu0 0.0
      %1013 = vmatmul.mubr.f32.gmra.mrb[0].mxu0 %v496
      %v1014 = vpop.f32.mrb[0].mxu0
      %v1015 = vadd.f32 0.0, %v1014
      %v1016 = vpop.f32.mrb[0].mxu0
      %1017 = vmatprep.mubr.f32.mxu0 0.0
      %1018 = vmatmul.mubr.f32.gmra.mrb[0].mxu0 %v499
      %v1019 = vpop.f32.mrb[0].mxu0
      %v1020 = vadd.f32 0.0, %v1019
      %v1021 = vpop.f32.mrb[0].mxu0
      %1022 = vmatprep.mubr.f32.mxu0 0.0
      %1023 = vmatmul.mubr.f32.gmra.mrb[0].mxu0 %v502
      %v1024 = vpop.f32.mrb[0].mxu0
      %v1025 = vadd.f32 0.0, %v1024
      %v1026 = vpop.f32.mrb[0].mxu0
      %1027 = vmatprep.mubr.f32.mxu0 0.0
      %1028 = vmatmul.mubr.f32.gmra.mrb[0].mxu0 %v505
      %v1029 = vpop.f32.mrb[0].mxu0
      %v1030 = vadd.f32 0.0, %v1029
      %v1031 = vpop.f32.mrb[0].mxu0
      %1032 = vmatprep.mubr.f32.mxu0 0.0
      %1033 = vmatmul.mubr.f32.gmra.mrb[0].mxu0 %v508
      %v1034 = vpop.f32.mrb[0].mxu0
      %v1035 = vadd.f32 0.0, %v1034
      %v1036 = vpop.f32.mrb[0].mxu0
      %1037 = vmatprep.mubr.f32.mxu0 0.0
      %1038 = vmatmul.mubr.f32.gmra.mrb[0].mxu0 %v511
      %v1039 = vpop.f32.mrb[0].mxu0
      %v1040 = vadd.f32 0.0, %v1039
      %v1041 = vpop.f32.mrb[0].mxu0
      %1042 = vmatprep.mubr.f32.mxu0 0.0
      %1043 = vmatmul.mubr.f32.gmra.mrb[0].mxu0 %v514
      %v1044 = vpop.f32.mrb[0].mxu0
      %v1045 = vadd.f32 0.0, %v1044
      %v1046 = vpop.f32.mrb[0].mxu0
      %1047 = vdwg.mxu0
      %v1048 = vmul.f32 %v900, %v1010
      %v1049 = vmul.f32 %v905, %v1015
      %v1050 = vmul.f32 %v910, %v1020
      %v1051 = vmul.f32 %v915, %v1025
      %v1052 = vmul.f32 %v920, %v1030
      %v1053 = vmul.f32 %v925, %v1035
      %v1054 = vmul.f32 %v930, %v1040
      %v1055 = vmul.f32 %v935, %v1045
      %v1056 = vld [vmem:[%s8] sm:$0xff]
      %v1057 = vld [vmem:[%s8 + $0x8] sm:$0xff]
      %v1058 = vld [vmem:[%s8 + $0x10] sm:$0xff]
      %v1059 = vld [vmem:[%s8 + $0x18] sm:$0xff]
      %v1060 = vld [vmem:[%s8 + $0x20] sm:$0xff]
      %v1061 = vld [vmem:[%s8 + $0x28] sm:$0xff]
      %vm1062 = vcmask 392192
      %v1064 = vsel %vm1062, %v1048, 0
      %v1067 = vsel %vm1062, %v1049, 0
      %v1070 = vsel %vm1062, %v1050, 0
      %v1073 = vsel %vm1062, %v1051, 0
      %v1076 = vsel %vm1062, %v1052, 0
      %v1079 = vsel %vm1062, %v1053, 0
      %v1082 = vsel %vm1062, %v1054, 0
      %v1085 = vsel %vm1062, %v1055, 0
      %1087 = vmatprep.subr.mxu0 0.0
      %1088 = vmatpush1.msra.mxu0 %v1056
      %1089 = vmatprep.subr.mxu0 0.0
      %1090 = vmatpush1.msra.mxu0 %v1057
      %1091 = vmatprep.subr.mxu0 0.0
      %1092 = vmatpush1.msra.mxu0 %v1058
      %1093 = vmatprep.subr.mxu0 0.0
      %1094 = vmatpush1.msra.mxu0 %v1059
      %1095 = vmatprep.subr.mxu0 0.0
      %1096 = vmatpush1.msra.mxu0 %v1060
      %1097 = vmatprep.subr.mxu0 0.0
      %1098 = vmatpush1.msra.mxu0 %v1061
      %1099 = vmatprep.subr.mxu0 0.0
      %1100 = vmatpush1.msra.mxu0 0.0
      %1101 = vmatprep.subr.mxu0 0.0
      %1102 = vmatpush1.msra.mxu0 0.0
      %1103 = vmatprep.subr.mxu0 0.0
      %1104 = vmatpush1.msra.mxu0 0.0
      %1105 = vmatprep.subr.mxu0 0.0
      %1106 = vmatpush1.msra.mxu0 0.0
      %1107 = vmatprep.subr.mxu0 0.0
      %1108 = vmatpush1.msra.mxu0 0.0
      %1109 = vmatprep.subr.mxu0 0.0
      %1110 = vmatpush1.msra.mxu0 0.0
      %1111 = vmatprep.subr.mxu0 0.0
      %1112 = vmatpush1.msra.mxu0 0.0
      %1113 = vmatprep.subr.mxu0 0.0
      %1114 = vmatpush1.msra.mxu0 0.0
      %1115 = vmatprep.subr.mxu0 0.0
      %1116 = vmatpush1.msra.mxu0 0.0
      %1117 = vmatprep.subr.mxu0 0.0
      %1118 = vmatpush1.msra.mxu0 0.0
      %1119 = vmatprep.subr.mxu0 0.0
      %1120 = vmatpush1.msra.mxu0 0.0
      %1121 = vmatprep.subr.mxu0 0.0
      %1122 = vmatpush1.msra.mxu0 0.0
      %1123 = vmatprep.subr.mxu0 0.0
      %1124 = vmatpush1.msra.mxu0 0.0
      %1125 = vmatprep.subr.mxu0 0.0
      %1126 = vmatpush1.msra.mxu0 0.0
      %1127 = vmatprep.subr.mxu0 0.0
      %1128 = vmatpush1.msra.mxu0 0.0
      %1129 = vmatprep.subr.mxu0 0.0
      %1130 = vmatpush1.msra.mxu0 0.0
      %1131 = vmatprep.subr.mxu0 0.0
      %1132 = vmatpush1.msra.mxu0 0.0
      %1133 = vmatprep.subr.mxu0 0.0
      %1134 = vmatpush1.msra.mxu0 0.0
      %1135 = vmatprep.subr.mxu0 0.0
      %1136 = vmatpush1.msra.mxu0 0.0
      %1137 = vmatprep.subr.mxu0 0.0
      %1138 = vmatpush1.msra.mxu0 0.0
      %1139 = vmatprep.subr.mxu0 0.0
      %1140 = vmatpush1.msra.mxu0 0.0
      %1141 = vmatprep.subr.mxu0 0.0
      %1142 = vmatpush1.msra.mxu0 0.0
      %1143 = vmatprep.subr.mxu0 0.0
      %1144 = vmatpush1.msra.mxu0 0.0
      %1145 = vmatprep.subr.mxu0 0.0
      %1146 = vmatpush1.msra.mxu0 0.0
      %1147 = vmatprep.subr.mxu0 0.0
      %1148 = vmatpush1.msra.mxu0 0.0
      %1149 = vmatprep.subr.mxu0 0.0
      %1150 = vmatpush1.msra.mxu0 0.0
      %1151 = vmatprep.mubr.f32.mxu0 0.0
      %1152 = vmatmul.mubr.f32.gmra.mrb[0].mxu0 %v1064
      %v1153 = vpop.f32.mrb[0].mxu0
      %v1154 = vadd.f32 0.0, %v1153
      %v1155 = vpop.f32.mrb[0].mxu0
      %1156 = vmatprep.mubr.f32.mxu0 0.0
      %1157 = vmatmul.mubr.f32.gmra.mrb[0].mxu0 %v1067
      %v1158 = vpop.f32.mrb[0].mxu0
      %v1159 = vadd.f32 0.0, %v1158
      %v1160 = vpop.f32.mrb[0].mxu0
      %1161 = vmatprep.mubr.f32.mxu0 0.0
      %1162 = vmatmul.mubr.f32.gmra.mrb[0].mxu0 %v1070
      %v1163 = vpop.f32.mrb[0].mxu0
      %v1164 = vadd.f32 0.0, %v1163
      %v1165 = vpop.f32.mrb[0].mxu0
      %1166 = vmatprep.mubr.f32.mxu0 0.0
      %1167 = vmatmul.mubr.f32.gmra.mrb[0].mxu0 %v1073
      %v1168 = vpop.f32.mrb[0].mxu0
      %v1169 = vadd.f32 0.0, %v1168
      %v1170 = vpop.f32.mrb[0].mxu0
      %1171 = vmatprep.mubr.f32.mxu0 0.0
      %1172 = vmatmul.mubr.f32.gmra.mrb[0].mxu0 %v1076
      %v1173 = vpop.f32.mrb[0].mxu0
      %v1174 = vadd.f32 0.0, %v1173
      %v1175 = vpop.f32.mrb[0].mxu0
      %1176 = vmatprep.mubr.f32.mxu0 0.0
      %1177 = vmatmul.mubr.f32.gmra.mrb[0].mxu0 %v1079
      %v1178 = vpop.f32.mrb[0].mxu0
      %v1179 = vadd.f32 0.0, %v1178
      %v1180 = vpop.f32.mrb[0].mxu0
      %1181 = vmatprep.mubr.f32.mxu0 0.0
      %1182 = vmatmul.mubr.f32.gmra.mrb[0].mxu0 %v1082
      %v1183 = vpop.f32.mrb[0].mxu0
      %v1184 = vadd.f32 0.0, %v1183
      %v1185 = vpop.f32.mrb[0].mxu0
      %1186 = vmatprep.mubr.f32.mxu0 0.0
      %1187 = vmatmul.mubr.f32.gmra.mrb[0].mxu0 %v1085
      %v1188 = vpop.f32.mrb[0].mxu0
      %v1189 = vadd.f32 0.0, %v1188
      %v1190 = vpop.f32.mrb[0].mxu0
      %1191 = vdwg.mxu0
      %1200 = vrot.lane.b32.xlu0 %v1154, 48
      %v1201 = vpop.permute.xlu0 %1200
      %1202 = vrot.lane.b32.xlu0 %v1159, 48
      %v1203 = vpop.permute.xlu0 %1202
      %1204 = vrot.lane.b32.xlu0 %v1164, 48
      %v1205 = vpop.permute.xlu0 %1204
      %1206 = vrot.lane.b32.xlu0 %v1169, 48
      %v1207 = vpop.permute.xlu0 %1206
      %1208 = vrot.lane.b32.xlu0 %v1174, 48
      %v1209 = vpop.permute.xlu0 %1208
      %1210 = vrot.lane.b32.xlu0 %v1179, 48
      %v1211 = vpop.permute.xlu0 %1210
      %1212 = vrot.lane.b32.xlu0 %v1184, 48
      %v1213 = vpop.permute.xlu0 %1212
      %1214 = vrot.lane.b32.xlu0 %v1189, 48
      %v1215 = vpop.permute.xlu0 %1214
      %v1224 = vsel %vm1062, %v900, %v1201
      %v1225 = vsel %vm1062, %v905, %v1203
      %v1226 = vsel %vm1062, %v910, %v1205
      %v1227 = vsel %vm1062, %v915, %v1207
      %v1228 = vsel %vm1062, %v920, %v1209
      %v1229 = vsel %vm1062, %v925, %v1211
      %v1230 = vsel %vm1062, %v930, %v1213
      %v1231 = vsel %vm1062, %v935, %v1215
      %vm1232 = vcmask 424960
      %1233 = vst.msk [vmem:[%s472] sm:$0xff] %vm1232, %v1224
      %1234 = vst.msk [vmem:[%s472 + $0x8] sm:$0xff] %vm1232, %v1225
      %1235 = vst.msk [vmem:[%s472 + $0x10] sm:$0xff] %vm1232, %v1226
      %1236 = vst.msk [vmem:[%s472 + $0x18] sm:$0xff] %vm1232, %v1227
      %1237 = vst.msk [vmem:[%s472 + $0x20] sm:$0xff] %vm1232, %v1228
      %1238 = vst.msk [vmem:[%s472 + $0x28] sm:$0xff] %vm1232, %v1229
      %1239 = vst.msk [vmem:[%s472 + $0x30] sm:$0xff] %vm1232, %v1230
      %1240 = vst.msk [vmem:[%s472 + $0x38] sm:$0xff] %vm1232, %v1231
      %s1241 = smul.u32 8, %s25
      %p1242 = scmp.lt.s32.totalorder %s24, 1
      %s1243 = scalar_select %p1242, %s24, 1
      %p1244 = scmp.lt.s32.totalorder %s1241, 7
      %s1245 = scalar_select %p1244, %s1241, 7
      %s1246 = smul.addr %s1243, 8
      %s1247 = sadd.s32 %s1245, %s1246
      %s1248 = smul.addr %s1247, 8
      %s1249 = scalar_lea.vmem %s9, %s1248
      // Predicated region
      $region57: #{aerca_forward.3} parent=55 // pred_check
        %p1250 = pneg %p278
      $region58: #{aerca_forward.3} parent=55 // pred_check_branch
        %1252 = sbr.rel (%p1250) target = $region60
      $region59: #{aerca_forward.3} parent=55 // pred_region
        %s1253 = smul.u32 8, %s25
      $region60: #{aerca_forward.3} parent=55 // pred_fallthru
        _
    $region56: #{aerca_forward.3} parent=5 // pred_fallthru
      _
    %p1254 = scmp.le.s32.totalorder 2, %s15
    // Predicated region
    $region61: #{aerca_forward.3} parent=5 // pred_check
      %p1255 = pneg %p1254
    $region62: #{aerca_forward.3} parent=5 // pred_check_branch
      %1257 = sbr.rel (%p1255) target = $region64
    $region63: #{aerca_forward.3} parent=5 // pred_region
      %s1258 = ssub.s32 %s15, 2
      // Predicated region
      $region65: #{aerca_forward.3} parent=63 // pred_check
        %p1259 = pneg %p284
      $region66: #{aerca_forward.3} parent=63 // pred_check_branch
        %1261 = sbr.rel (%p1259) target = $region68
      $region67: #{aerca_forward.3} parent=63 // pred_region
        %s1262 = smul.u32 8, %s27
        %p1263 = scmp.lt.s32.totalorder %s26, 1
        %s1264 = scalar_select %p1263, %s26, 1
        %p1265 = scmp.lt.s32.totalorder %s1262, 7
        %s1266 = scalar_select %p1265, %s1262, 7
        %s1267 = smul.addr %s1264, 8
        %s1268 = sadd.s32 %s1266, %s1267
        %s1269 = smul.addr %s1268, 8
        %s1270 = scalar_lea.vmem %s9, %s1269
      $region68: #{aerca_forward.3} parent=63 // pred_fallthru
        _
    $region64: #{aerca_forward.3} parent=5 // pred_fallthru
      _
  $region6: #{aerca_forward.3} parent=0 // loop_footer
    %s19 = sadd.s32 1, %s15
  $region7: #{aerca_forward.3} parent=0 // loop_footer_branch
    %14 = sbr.rel target = $region3
  $region8: #{aerca_forward.3} parent=0 // loop_exit
    _

</llo_original>
